<compile_context>
chip_gen: v5e
topology: v5e:2x2
jax: 0.10.0
libtpu: 0.0.40
codegen_flags: <defaults>
</compile_context>

<pallas_src>
import math

import jax
import jax.numpy as jnp
from jax.experimental import pallas as pl
from jax.experimental.pallas import tpu as pltpu

# ---------------- configuration (small, consistent with the module) ----------------
DIM_MODEL = 8
NUM_HEADS = 2
DIM_K = DIM_MODEL // NUM_HEADS        # 4
DIM_V = DIM_K                         # 4
DIM_FF = 64
SEQ = 8
BATCH = 2
LN_EPS = 1e-5

HK = NUM_HEADS * DIM_K                # 8
HV = NUM_HEADS * DIM_V                # 8


# ---------------- kernel ----------------
def _layer_norm(x, gamma, beta):
    mu = jnp.mean(x, axis=-1, keepdims=True)
    xc = x - mu
    var = jnp.mean(xc * xc, axis=-1, keepdims=True)
    return xc * jax.lax.rsqrt(var + LN_EPS) * gamma + beta


def decoder_layer_kernel(
    tgt_ref, mem_ref,
    # attention_1 (self-attn on tgt): fused QKV projection
    wqkv1_ref, bqkv1_ref, wo1_ref, bo1_ref, g1_ref, be1_ref,
    # attention_2 (query=memory, key=memory, value=x): fused QK on memory, V on x
    wqk2_ref, bqk2_ref, wv2_ref, bv2_ref, wo2_ref, bo2_ref, g2_ref, be2_ref,
    # feed-forward + final LayerNorm
    wf1_ref, bf1_ref, wf2_ref, bf2_ref, g3_ref, be3_ref,
    out_ref,
):
    x0 = tgt_ref[...]        # (B*S, D)
    mem = mem_ref[...]       # (B*S, D)

    def softmax(s):
        s = s - jnp.max(s, axis=-1, keepdims=True)
        e = jnp.exp(s)
        return e * pl.reciprocal(jnp.sum(e, axis=-1, keepdims=True), approx=True)

    def attend(q_all, k_all, v_all):
        # q_all, k_all: (B*S, H*dk); v_all: (B*S, H*dv).  Scale already folded into Q.
        rows = []
        for b in range(BATCH):                      # static unroll over batch
            r0 = b * SEQ
            heads = []
            for h in range(NUM_HEADS):              # static unroll over heads
                q = q_all[r0:r0 + SEQ, h * DIM_K:(h + 1) * DIM_K]
                k = k_all[r0:r0 + SEQ, h * DIM_K:(h + 1) * DIM_K]
                v = v_all[r0:r0 + SEQ, h * DIM_V:(h + 1) * DIM_V]
                p = softmax(jnp.dot(q, k.T, preferred_element_type=jnp.float32))
                heads.append(jnp.dot(p, v, preferred_element_type=jnp.float32))
            rows.append(jnp.concatenate(heads, axis=-1))      # (S, H*dv)
        return jnp.concatenate(rows, axis=0)                  # (B*S, H*dv)

    # --- attention_1: norm(tgt + MHA(tgt, tgt, tgt)) ---
    qkv1 = jnp.dot(x0, wqkv1_ref[...], preferred_element_type=jnp.float32) + bqkv1_ref[...]
    ctx1 = attend(qkv1[:, :HK], qkv1[:, HK:2 * HK], qkv1[:, 2 * HK:])
    a1 = jnp.dot(ctx1, wo1_ref[...], preferred_element_type=jnp.float32) + bo1_ref[...]
    x = _layer_norm(x0 + a1, g1_ref[...], be1_ref[...])

    # --- attention_2: norm(x + MHA(memory, memory, x)) ---
    qk2 = jnp.dot(mem, wqk2_ref[...], preferred_element_type=jnp.float32) + bqk2_ref[...]
    v2 = jnp.dot(x, wv2_ref[...], preferred_element_type=jnp.float32) + bv2_ref[...]
    ctx2 = attend(qk2[:, :HK], qk2[:, HK:], v2)
    a2 = jnp.dot(ctx2, wo2_ref[...], preferred_element_type=jnp.float32) + bo2_ref[...]
    x = _layer_norm(x + a2, g2_ref[...], be2_ref[...])

    # --- feed forward: norm(x + W2 relu(W1 x + b1) + b2) ---
    h1 = jnp.dot(x, wf1_ref[...], preferred_element_type=jnp.float32) + bf1_ref[...]
    h1 = jnp.maximum(h1, 0.0)
    f = jnp.dot(h1, wf2_ref[...], preferred_element_type=jnp.float32) + bf2_ref[...]
    out_ref[...] = _layer_norm(x + f, g3_ref[...], be3_ref[...])


# ---------------- wrapper ----------------
def transformer_decoder_layer(tgt, memory, packed_params):
    B, S, D = tgt.shape
    tgt2d = tgt.reshape(B * S, D)          # XLA-side reshape; kernel works on 2D rows
    mem2d = memory.reshape(B * S, D)

    n_in = 2 + len(packed_params)
    vmem_spec = lambda: pl.BlockSpec(memory_space=pltpu.MemorySpace.VMEM)

    out2d = pl.pallas_call(
        decoder_layer_kernel,
        out_shape=jax.ShapeDtypeStruct((B * S, D), jnp.float32),
        in_specs=[vmem_spec() for _ in range(n_in)],
        out_specs=vmem_spec(),
    )(tgt2d, mem2d, *packed_params)
    return out2d.reshape(B, S, D)


# ---------------- deterministic parameter init (torch nn.Linear style) ----------------
def _linear(key, fan_in, fan_out):
    bound = 1.0 / math.sqrt(fan_in)
    kw, kb = jax.random.split(key)
    w = jax.random.uniform(kw, (fan_in, fan_out), jnp.float32, -bound, bound)
    b = jax.random.uniform(kb, (fan_out,), jnp.float32, -bound, bound)
    return w, b


def _init_mha(key):
    kq, kk, kv, ko = jax.random.split(key, 4)

    def heads(k, dout):
        ks = jax.random.split(k, NUM_HEADS)
        ws, bs = zip(*[_linear(ks[h], DIM_MODEL, dout) for h in range(NUM_HEADS)])
        return jnp.stack(ws), jnp.stack(bs)          # (H, D, dout), (H, dout)

    wq, bq = heads(kq, DIM_K)
    wk, bk = heads(kk, DIM_K)
    wv, bv = heads(kv, DIM_V)
    wo, bo = _linear(ko, NUM_HEADS * DIM_V, DIM_MODEL)
    return [wq, bq, wk, bk, wv, bv, wo, bo]


def init_params(key):
    k1, k2, kf1, kf2 = jax.random.split(key, 4)
    ones = jnp.ones((DIM_MODEL,), jnp.float32)
    zeros = jnp.zeros((DIM_MODEL,), jnp.float32)

    p = _init_mha(k1) + [ones, zeros]                # attention_1 + LayerNorm1
    p += _init_mha(k2) + [ones, zeros]               # attention_2 + LayerNorm2

    wf1, bf1 = _linear(kf1, DIM_MODEL, DIM_FF)
    wf2, bf2 = _linear(kf2, DIM_FF, DIM_MODEL)
    p += [wf1, bf1, wf2, bf2, ones, zeros]           # FFN + LayerNorm3
    return p


# ---------------- pack torch-style params into fused kernel params ----------------
def pack_params(params):
    (wq1, bq1, wk1, bk1, wv1, bv1, wo1, bo1, g1, be1,
     wq2, bq2, wk2, bk2, wv2, bv2, wo2, bo2, g2, be2,
     wf1, bf1, wf2, bf2, g3, be3) = params
    scale = 1.0 / math.sqrt(DIM_K)

    def cat_w(w):   # (H, D, dout) -> (D, H*dout), heads contiguous along lanes
        return jnp.concatenate([w[h] for h in range(NUM_HEADS)], axis=-1)

    def cat_b(b):   # (H, dout) -> (1, H*dout)
        return jnp.concatenate([b[h] for h in range(NUM_HEADS)], axis=-1)[None, :]

    # attention_1: fused [Q | K | V] with the 1/sqrt(dk) scale folded into Q
    wqkv1 = jnp.concatenate([cat_w(wq1) * scale, cat_w(wk1), cat_w(wv1)], axis=-1)
    bqkv1 = jnp.concatenate([cat_b(bq1) * scale, cat_b(bk1), cat_b(bv1)], axis=-1)

    # attention_2: fused [Q | K] applied to memory, V applied to x
    wqk2 = jnp.concatenate([cat_w(wq2) * scale, cat_w(wk2)], axis=-1)
    bqk2 = jnp.concatenate([cat_b(bq2) * scale, cat_b(bk2)], axis=-1)
    wv2c = cat_w(wv2)
    bv2c = cat_b(bv2)

    return [
        wqkv1, bqkv1, wo1, bo1[None, :], g1[None, :], be1[None, :],
        wqk2, bqk2, wv2c, bv2c, wo2, bo2[None, :], g2[None, :], be2[None, :],
        wf1, bf1[None, :], wf2, bf2[None, :], g3[None, :], be3[None, :],
    ]


# ---------------- pure-JAX reference (correctness check) ----------------
def reference(tgt, memory, params):
    (wq1, bq1, wk1, bk1, wv1, bv1, wo1, bo1, g1, be1,
     wq2, bq2, wk2, bk2, wv2, bv2, wo2, bo2, g2, be2,
     wf1, bf1, wf2, bf2, g3, be3) = params

    def ln(x, g, b):
        mu = jnp.mean(x, -1, keepdims=True)
        var = jnp.mean((x - mu) ** 2, -1, keepdims=True)
        return (x - mu) / jnp.sqrt(var + LN_EPS) * g + b

    def mha(qi, ki, vi, wq, bq, wk, bk, wv, bv, wo, bo):
        outs = []
        for h in range(NUM_HEADS):
            q = qi @ wq[h] + bq[h]
            k = ki @ wk[h] + bk[h]
            v = vi @ wv[h] + bv[h]
            s = jnp.einsum('bqd,bkd->bqk', q, k) / math.sqrt(DIM_K)
            p = jax.nn.softmax(s, axis=-1)
            outs.append(jnp.einsum('bqk,bkd->bqd', p, v))
        return jnp.concatenate(outs, -1) @ wo + bo

    x = ln(tgt + mha(tgt, tgt, tgt, wq1, bq1, wk1, bk1, wv1, bv1, wo1, bo1), g1, be1)
    x = ln(x + mha(memory, memory, x, wq2, bq2, wk2, bk2, wv2, bv2, wo2, bo2), g2, be2)
    f = jnp.maximum(x @ wf1 + bf1, 0.0) @ wf2 + bf2
    return ln(x + f, g3, be3)


# ---------------- main ----------------
if __name__ == "__main__":
    key = jax.random.PRNGKey(0)
    k_p, k_t, k_m = jax.random.split(key, 3)

    params = init_params(k_p)
    packed = pack_params(params)
    tgt = jax.random.normal(k_t, (BATCH, SEQ, DIM_MODEL), jnp.float32)
    memory = jax.random.normal(k_m, (BATCH, SEQ, DIM_MODEL), jnp.float32)

    out = jax.block_until_ready(transformer_decoder_layer(tgt, memory, packed))
    ref = jax.block_until_ready(reference(tgt, memory, params))

    assert out.shape == (BATCH, SEQ, DIM_MODEL)
    assert jnp.allclose(out, ref, atol=2e-3, rtol=2e-3), "kernel/reference mismatch"

    print("KERNEL_OK")
</pallas_src>

<mosaic_0001>
module attributes {stable_mosaic.version = 11 : i64} {
  func.func @decoder_layer_kernel(%arg0: memref<16x8xf32, #tpu.memory_space<vmem>>, %arg1: memref<16x8xf32, #tpu.memory_space<vmem>>, %arg2: memref<8x24xf32, #tpu.memory_space<vmem>>, %arg3: memref<1x24xf32, #tpu.memory_space<vmem>>, %arg4: memref<8x8xf32, #tpu.memory_space<vmem>>, %arg5: memref<1x8xf32, #tpu.memory_space<vmem>>, %arg6: memref<1x8xf32, #tpu.memory_space<vmem>>, %arg7: memref<1x8xf32, #tpu.memory_space<vmem>>, %arg8: memref<8x16xf32, #tpu.memory_space<vmem>>, %arg9: memref<1x16xf32, #tpu.memory_space<vmem>>, %arg10: memref<8x8xf32, #tpu.memory_space<vmem>>, %arg11: memref<1x8xf32, #tpu.memory_space<vmem>>, %arg12: memref<8x8xf32, #tpu.memory_space<vmem>>, %arg13: memref<1x8xf32, #tpu.memory_space<vmem>>, %arg14: memref<1x8xf32, #tpu.memory_space<vmem>>, %arg15: memref<1x8xf32, #tpu.memory_space<vmem>>, %arg16: memref<8x64xf32, #tpu.memory_space<vmem>>, %arg17: memref<1x64xf32, #tpu.memory_space<vmem>>, %arg18: memref<64x8xf32, #tpu.memory_space<vmem>>, %arg19: memref<1x8xf32, #tpu.memory_space<vmem>>, %arg20: memref<1x8xf32, #tpu.memory_space<vmem>>, %arg21: memref<1x8xf32, #tpu.memory_space<vmem>>, %arg22: memref<16x8xf32, #tpu.memory_space<vmem>>) attributes {dimension_semantics = [], scalar_prefetch = 0 : i64, scratch_operands = 0 : i64, tpu.core_type = #tpu.core_type<tc>} {
    %c0 = arith.constant 0 : index
    %c0_0 = arith.constant 0 : index
    %0 = vector.load %arg0[%c0, %c0_0] : memref<16x8xf32, #tpu.memory_space<vmem>>, vector<16x8xf32>
    %c0_1 = arith.constant 0 : index
    %c0_2 = arith.constant 0 : index
    %1 = vector.load %arg1[%c0_1, %c0_2] : memref<16x8xf32, #tpu.memory_space<vmem>>, vector<16x8xf32>
    %c0_3 = arith.constant 0 : index
    %c0_4 = arith.constant 0 : index
    %2 = vector.load %arg2[%c0_3, %c0_4] : memref<8x24xf32, #tpu.memory_space<vmem>>, vector<8x24xf32>
    %cst = arith.constant dense<0.000000e+00> : vector<16x24xf32>
    %3 = tpu.matmul %0, %2, %cst {dimension_numbers = #tpu.dot_dimension_numbers<[1], [0], [0], [1], [0, 0, 1, 1], [], []>} : vector<16x8xf32>, vector<8x24xf32>, vector<16x24xf32> -> vector<16x24xf32>
    %c0_5 = arith.constant 0 : index
    %c0_6 = arith.constant 0 : index
    %4 = vector.load %arg3[%c0_5, %c0_6] : memref<1x24xf32, #tpu.memory_space<vmem>>, vector<1x24xf32>
    %5 = vector.broadcast %4 : vector<1x24xf32> to vector<16x24xf32>
    %6 = arith.addf %3, %5 : vector<16x24xf32>
    %7 = vector.extract_strided_slice %6 {offsets = [0, 0], sizes = [16, 8], strides = [1, 1]} : vector<16x24xf32> to vector<16x8xf32>
    %8 = vector.extract_strided_slice %6 {offsets = [0, 8], sizes = [16, 8], strides = [1, 1]} : vector<16x24xf32> to vector<16x8xf32>
    %9 = vector.extract_strided_slice %6 {offsets = [0, 16], sizes = [16, 8], strides = [1, 1]} : vector<16x24xf32> to vector<16x8xf32>
    %10 = vector.extract_strided_slice %7 {offsets = [0, 0], sizes = [8, 4], strides = [1, 1]} : vector<16x8xf32> to vector<8x4xf32>
    %11 = vector.extract_strided_slice %8 {offsets = [0, 0], sizes = [8, 4], strides = [1, 1]} : vector<16x8xf32> to vector<8x4xf32>
    %12 = vector.extract_strided_slice %9 {offsets = [0, 0], sizes = [8, 4], strides = [1, 1]} : vector<16x8xf32> to vector<8x4xf32>
    %13 = tpu.transpose %11, [1, 0] : vector<8x4xf32> -> vector<4x8xf32>
    %cst_7 = arith.constant dense<0.000000e+00> : vector<8x8xf32>
    %14 = tpu.matmul %10, %13, %cst_7 {dimension_numbers = #tpu.dot_dimension_numbers<[1], [0], [0], [1], [0, 0, 1, 1], [], []>} : vector<8x4xf32>, vector<4x8xf32>, vector<8x8xf32> -> vector<8x8xf32>
    %cst_8 = arith.constant dense<0xFF800000> : vector<8xf32>
    %15 = vector.multi_reduction <maximumf>, %14, %cst_8 [1] : vector<8x8xf32> to vector<8xf32>
    %16 = vector.shape_cast %15 : vector<8xf32> to vector<8x1xf32>
    %17 = vector.broadcast %16 : vector<8x1xf32> to vector<8x8xf32>
    %18 = arith.subf %14, %17 : vector<8x8xf32>
    %19 = math.exp %18 : vector<8x8xf32>
    %cst_9 = arith.constant dense<0.000000e+00> : vector<8xf32>
    %20 = vector.multi_reduction <add>, %19, %cst_9 [1] : vector<8x8xf32> to vector<8xf32>
    %21 = vector.shape_cast %20 : vector<8xf32> to vector<8x1xf32>
    %22 = tpu.reciprocal %21 {approx = true} : vector<8x1xf32> -> vector<8x1xf32>
    %23 = vector.broadcast %22 : vector<8x1xf32> to vector<8x8xf32>
    %24 = arith.mulf %19, %23 : vector<8x8xf32>
    %cst_10 = arith.constant dense<0.000000e+00> : vector<8x4xf32>
    %25 = tpu.matmul %24, %12, %cst_10 {dimension_numbers = #tpu.dot_dimension_numbers<[1], [0], [0], [1], [0, 0, 1, 1], [], []>} : vector<8x8xf32>, vector<8x4xf32>, vector<8x4xf32> -> vector<8x4xf32>
    %26 = vector.extract_strided_slice %7 {offsets = [0, 4], sizes = [8, 4], strides = [1, 1]} : vector<16x8xf32> to vector<8x4xf32>
    %27 = vector.extract_strided_slice %8 {offsets = [0, 4], sizes = [8, 4], strides = [1, 1]} : vector<16x8xf32> to vector<8x4xf32>
    %28 = vector.extract_strided_slice %9 {offsets = [0, 4], sizes = [8, 4], strides = [1, 1]} : vector<16x8xf32> to vector<8x4xf32>
    %29 = tpu.transpose %27, [1, 0] : vector<8x4xf32> -> vector<4x8xf32>
    %cst_11 = arith.constant dense<0.000000e+00> : vector<8x8xf32>
    %30 = tpu.matmul %26, %29, %cst_11 {dimension_numbers = #tpu.dot_dimension_numbers<[1], [0], [0], [1], [0, 0, 1, 1], [], []>} : vector<8x4xf32>, vector<4x8xf32>, vector<8x8xf32> -> vector<8x8xf32>
    %cst_12 = arith.constant dense<0xFF800000> : vector<8xf32>
    %31 = vector.multi_reduction <maximumf>, %30, %cst_12 [1] : vector<8x8xf32> to vector<8xf32>
    %32 = vector.shape_cast %31 : vector<8xf32> to vector<8x1xf32>
    %33 = vector.broadcast %32 : vector<8x1xf32> to vector<8x8xf32>
    %34 = arith.subf %30, %33 : vector<8x8xf32>
    %35 = math.exp %34 : vector<8x8xf32>
    %cst_13 = arith.constant dense<0.000000e+00> : vector<8xf32>
    %36 = vector.multi_reduction <add>, %35, %cst_13 [1] : vector<8x8xf32> to vector<8xf32>
    %37 = vector.shape_cast %36 : vector<8xf32> to vector<8x1xf32>
    %38 = tpu.reciprocal %37 {approx = true} : vector<8x1xf32> -> vector<8x1xf32>
    %39 = vector.broadcast %38 : vector<8x1xf32> to vector<8x8xf32>
    %40 = arith.mulf %35, %39 : vector<8x8xf32>
    %cst_14 = arith.constant dense<0.000000e+00> : vector<8x4xf32>
    %41 = tpu.matmul %40, %28, %cst_14 {dimension_numbers = #tpu.dot_dimension_numbers<[1], [0], [0], [1], [0, 0, 1, 1], [], []>} : vector<8x8xf32>, vector<8x4xf32>, vector<8x4xf32> -> vector<8x4xf32>
    %42 = tpu.concatenate %25, %41 in 1 : vector<8x4xf32>, vector<8x4xf32> -> vector<8x8xf32>
    %43 = vector.extract_strided_slice %7 {offsets = [8, 0], sizes = [8, 4], strides = [1, 1]} : vector<16x8xf32> to vector<8x4xf32>
    %44 = vector.extract_strided_slice %8 {offsets = [8, 0], sizes = [8, 4], strides = [1, 1]} : vector<16x8xf32> to vector<8x4xf32>
    %45 = vector.extract_strided_slice %9 {offsets = [8, 0], sizes = [8, 4], strides = [1, 1]} : vector<16x8xf32> to vector<8x4xf32>
    %46 = tpu.transpose %44, [1, 0] : vector<8x4xf32> -> vector<4x8xf32>
    %cst_15 = arith.constant dense<0.000000e+00> : vector<8x8xf32>
    %47 = tpu.matmul %43, %46, %cst_15 {dimension_numbers = #tpu.dot_dimension_numbers<[1], [0], [0], [1], [0, 0, 1, 1], [], []>} : vector<8x4xf32>, vector<4x8xf32>, vector<8x8xf32> -> vector<8x8xf32>
    %cst_16 = arith.constant dense<0xFF800000> : vector<8xf32>
    %48 = vector.multi_reduction <maximumf>, %47, %cst_16 [1] : vector<8x8xf32> to vector<8xf32>
    %49 = vector.shape_cast %48 : vector<8xf32> to vector<8x1xf32>
    %50 = vector.broadcast %49 : vector<8x1xf32> to vector<8x8xf32>
    %51 = arith.subf %47, %50 : vector<8x8xf32>
    %52 = math.exp %51 : vector<8x8xf32>
    %cst_17 = arith.constant dense<0.000000e+00> : vector<8xf32>
    %53 = vector.multi_reduction <add>, %52, %cst_17 [1] : vector<8x8xf32> to vector<8xf32>
    %54 = vector.shape_cast %53 : vector<8xf32> to vector<8x1xf32>
    %55 = tpu.reciprocal %54 {approx = true} : vector<8x1xf32> -> vector<8x1xf32>
    %56 = vector.broadcast %55 : vector<8x1xf32> to vector<8x8xf32>
    %57 = arith.mulf %52, %56 : vector<8x8xf32>
    %cst_18 = arith.constant dense<0.000000e+00> : vector<8x4xf32>
    %58 = tpu.matmul %57, %45, %cst_18 {dimension_numbers = #tpu.dot_dimension_numbers<[1], [0], [0], [1], [0, 0, 1, 1], [], []>} : vector<8x8xf32>, vector<8x4xf32>, vector<8x4xf32> -> vector<8x4xf32>
    %59 = vector.extract_strided_slice %7 {offsets = [8, 4], sizes = [8, 4], strides = [1, 1]} : vector<16x8xf32> to vector<8x4xf32>
    %60 = vector.extract_strided_slice %8 {offsets = [8, 4], sizes = [8, 4], strides = [1, 1]} : vector<16x8xf32> to vector<8x4xf32>
    %61 = vector.extract_strided_slice %9 {offsets = [8, 4], sizes = [8, 4], strides = [1, 1]} : vector<16x8xf32> to vector<8x4xf32>
    %62 = tpu.transpose %60, [1, 0] : vector<8x4xf32> -> vector<4x8xf32>
    %cst_19 = arith.constant dense<0.000000e+00> : vector<8x8xf32>
    %63 = tpu.matmul %59, %62, %cst_19 {dimension_numbers = #tpu.dot_dimension_numbers<[1], [0], [0], [1], [0, 0, 1, 1], [], []>} : vector<8x4xf32>, vector<4x8xf32>, vector<8x8xf32> -> vector<8x8xf32>
    %cst_20 = arith.constant dense<0xFF800000> : vector<8xf32>
    %64 = vector.multi_reduction <maximumf>, %63, %cst_20 [1] : vector<8x8xf32> to vector<8xf32>
    %65 = vector.shape_cast %64 : vector<8xf32> to vector<8x1xf32>
    %66 = vector.broadcast %65 : vector<8x1xf32> to vector<8x8xf32>
    %67 = arith.subf %63, %66 : vector<8x8xf32>
    %68 = math.exp %67 : vector<8x8xf32>
    %cst_21 = arith.constant dense<0.000000e+00> : vector<8xf32>
    %69 = vector.multi_reduction <add>, %68, %cst_21 [1] : vector<8x8xf32> to vector<8xf32>
    %70 = vector.shape_cast %69 : vector<8xf32> to vector<8x1xf32>
    %71 = tpu.reciprocal %70 {approx = true} : vector<8x1xf32> -> vector<8x1xf32>
    %72 = vector.broadcast %71 : vector<8x1xf32> to vector<8x8xf32>
    %73 = arith.mulf %68, %72 : vector<8x8xf32>
    %cst_22 = arith.constant dense<0.000000e+00> : vector<8x4xf32>
    %74 = tpu.matmul %73, %61, %cst_22 {dimension_numbers = #tpu.dot_dimension_numbers<[1], [0], [0], [1], [0, 0, 1, 1], [], []>} : vector<8x8xf32>, vector<8x4xf32>, vector<8x4xf32> -> vector<8x4xf32>
    %75 = tpu.concatenate %58, %74 in 1 : vector<8x4xf32>, vector<8x4xf32> -> vector<8x8xf32>
    %76 = tpu.concatenate %42, %75 in 0 : vector<8x8xf32>, vector<8x8xf32> -> vector<16x8xf32>
    %c0_23 = arith.constant 0 : index
    %c0_24 = arith.constant 0 : index
    %77 = vector.load %arg4[%c0_23, %c0_24] : memref<8x8xf32, #tpu.memory_space<vmem>>, vector<8x8xf32>
    %cst_25 = arith.constant dense<0.000000e+00> : vector<16x8xf32>
    %78 = tpu.matmul %76, %77, %cst_25 {dimension_numbers = #tpu.dot_dimension_numbers<[1], [0], [0], [1], [0, 0, 1, 1], [], []>} : vector<16x8xf32>, vector<8x8xf32>, vector<16x8xf32> -> vector<16x8xf32>
    %c0_26 = arith.constant 0 : index
    %c0_27 = arith.constant 0 : index
    %79 = vector.load %arg5[%c0_26, %c0_27] : memref<1x8xf32, #tpu.memory_space<vmem>>, vector<1x8xf32>
    %80 = vector.broadcast %79 : vector<1x8xf32> to vector<16x8xf32>
    %81 = arith.addf %78, %80 : vector<16x8xf32>
    %82 = arith.addf %0, %81 : vector<16x8xf32>
    %c0_28 = arith.constant 0 : index
    %c0_29 = arith.constant 0 : index
    %83 = vector.load %arg6[%c0_28, %c0_29] : memref<1x8xf32, #tpu.memory_space<vmem>>, vector<1x8xf32>
    %c0_30 = arith.constant 0 : index
    %c0_31 = arith.constant 0 : index
    %84 = vector.load %arg7[%c0_30, %c0_31] : memref<1x8xf32, #tpu.memory_space<vmem>>, vector<1x8xf32>
    %cst_32 = arith.constant dense<0.000000e+00> : vector<16xf32>
    %85 = vector.multi_reduction <add>, %82, %cst_32 [1] : vector<16x8xf32> to vector<16xf32>
    %86 = vector.shape_cast %85 : vector<16xf32> to vector<16x1xf32>
    %cst_33 = arith.constant 8.000000e+00 : f32
    %87 = vector.broadcast %cst_33 : f32 to vector<16x1xf32>
    %88 = arith.divf %86, %87 : vector<16x1xf32>
    %89 = vector.broadcast %88 : vector<16x1xf32> to vector<16x8xf32>
    %90 = arith.subf %82, %89 : vector<16x8xf32>
    %91 = arith.mulf %90, %90 : vector<16x8xf32>
    %cst_34 = arith.constant dense<0.000000e+00> : vector<16xf32>
    %92 = vector.multi_reduction <add>, %91, %cst_34 [1] : vector<16x8xf32> to vector<16xf32>
    %93 = vector.shape_cast %92 : vector<16xf32> to vector<16x1xf32>
    %cst_35 = arith.constant 8.000000e+00 : f32
    %94 = vector.broadcast %cst_35 : f32 to vector<16x1xf32>
    %95 = arith.divf %93, %94 : vector<16x1xf32>
    %cst_36 = arith.constant 9.99999974E-6 : f32
    %96 = vector.broadcast %cst_36 : f32 to vector<16x1xf32>
    %97 = arith.addf %95, %96 : vector<16x1xf32>
    %98 = math.rsqrt %97 : vector<16x1xf32>
    %99 = vector.broadcast %98 : vector<16x1xf32> to vector<16x8xf32>
    %100 = arith.mulf %90, %99 : vector<16x8xf32>
    %101 = vector.broadcast %83 : vector<1x8xf32> to vector<16x8xf32>
    %102 = arith.mulf %100, %101 : vector<16x8xf32>
    %103 = vector.broadcast %84 : vector<1x8xf32> to vector<16x8xf32>
    %104 = arith.addf %102, %103 : vector<16x8xf32>
    %c0_37 = arith.constant 0 : index
    %c0_38 = arith.constant 0 : index
    %105 = vector.load %arg8[%c0_37, %c0_38] : memref<8x16xf32, #tpu.memory_space<vmem>>, vector<8x16xf32>
    %cst_39 = arith.constant dense<0.000000e+00> : vector<16x16xf32>
    %106 = tpu.matmul %1, %105, %cst_39 {dimension_numbers = #tpu.dot_dimension_numbers<[1], [0], [0], [1], [0, 0, 1, 1], [], []>} : vector<16x8xf32>, vector<8x16xf32>, vector<16x16xf32> -> vector<16x16xf32>
    %c0_40 = arith.constant 0 : index
    %c0_41 = arith.constant 0 : index
    %107 = vector.load %arg9[%c0_40, %c0_41] : memref<1x16xf32, #tpu.memory_space<vmem>>, vector<1x16xf32>
    %108 = vector.broadcast %107 : vector<1x16xf32> to vector<16x16xf32>
    %109 = arith.addf %106, %108 : vector<16x16xf32>
    %c0_42 = arith.constant 0 : index
    %c0_43 = arith.constant 0 : index
    %110 = vector.load %arg10[%c0_42, %c0_43] : memref<8x8xf32, #tpu.memory_space<vmem>>, vector<8x8xf32>
    %cst_44 = arith.constant dense<0.000000e+00> : vector<16x8xf32>
    %111 = tpu.matmul %104, %110, %cst_44 {dimension_numbers = #tpu.dot_dimension_numbers<[1], [0], [0], [1], [0, 0, 1, 1], [], []>} : vector<16x8xf32>, vector<8x8xf32>, vector<16x8xf32> -> vector<16x8xf32>
    %c0_45 = arith.constant 0 : index
    %c0_46 = arith.constant 0 : index
    %112 = vector.load %arg11[%c0_45, %c0_46] : memref<1x8xf32, #tpu.memory_space<vmem>>, vector<1x8xf32>
    %113 = vector.broadcast %112 : vector<1x8xf32> to vector<16x8xf32>
    %114 = arith.addf %111, %113 : vector<16x8xf32>
    %115 = vector.extract_strided_slice %109 {offsets = [0, 0], sizes = [16, 8], strides = [1, 1]} : vector<16x16xf32> to vector<16x8xf32>
    %116 = vector.extract_strided_slice %109 {offsets = [0, 8], sizes = [16, 8], strides = [1, 1]} : vector<16x16xf32> to vector<16x8xf32>
    %117 = vector.extract_strided_slice %115 {offsets = [0, 0], sizes = [8, 4], strides = [1, 1]} : vector<16x8xf32> to vector<8x4xf32>
    %118 = vector.extract_strided_slice %116 {offsets = [0, 0], sizes = [8, 4], strides = [1, 1]} : vector<16x8xf32> to vector<8x4xf32>
    %119 = vector.extract_strided_slice %114 {offsets = [0, 0], sizes = [8, 4], strides = [1, 1]} : vector<16x8xf32> to vector<8x4xf32>
    %120 = tpu.transpose %118, [1, 0] : vector<8x4xf32> -> vector<4x8xf32>
    %cst_47 = arith.constant dense<0.000000e+00> : vector<8x8xf32>
    %121 = tpu.matmul %117, %120, %cst_47 {dimension_numbers = #tpu.dot_dimension_numbers<[1], [0], [0], [1], [0, 0, 1, 1], [], []>} : vector<8x4xf32>, vector<4x8xf32>, vector<8x8xf32> -> vector<8x8xf32>
    %cst_48 = arith.constant dense<0xFF800000> : vector<8xf32>
    %122 = vector.multi_reduction <maximumf>, %121, %cst_48 [1] : vector<8x8xf32> to vector<8xf32>
    %123 = vector.shape_cast %122 : vector<8xf32> to vector<8x1xf32>
    %124 = vector.broadcast %123 : vector<8x1xf32> to vector<8x8xf32>
    %125 = arith.subf %121, %124 : vector<8x8xf32>
    %126 = math.exp %125 : vector<8x8xf32>
    %cst_49 = arith.constant dense<0.000000e+00> : vector<8xf32>
    %127 = vector.multi_reduction <add>, %126, %cst_49 [1] : vector<8x8xf32> to vector<8xf32>
    %128 = vector.shape_cast %127 : vector<8xf32> to vector<8x1xf32>
    %129 = tpu.reciprocal %128 {approx = true} : vector<8x1xf32> -> vector<8x1xf32>
    %130 = vector.broadcast %129 : vector<8x1xf32> to vector<8x8xf32>
    %131 = arith.mulf %126, %130 : vector<8x8xf32>
    %cst_50 = arith.constant dense<0.000000e+00> : vector<8x4xf32>
    %132 = tpu.matmul %131, %119, %cst_50 {dimension_numbers = #tpu.dot_dimension_numbers<[1], [0], [0], [1], [0, 0, 1, 1], [], []>} : vector<8x8xf32>, vector<8x4xf32>, vector<8x4xf32> -> vector<8x4xf32>
    %133 = vector.extract_strided_slice %115 {offsets = [0, 4], sizes = [8, 4], strides = [1, 1]} : vector<16x8xf32> to vector<8x4xf32>
    %134 = vector.extract_strided_slice %116 {offsets = [0, 4], sizes = [8, 4], strides = [1, 1]} : vector<16x8xf32> to vector<8x4xf32>
    %135 = vector.extract_strided_slice %114 {offsets = [0, 4], sizes = [8, 4], strides = [1, 1]} : vector<16x8xf32> to vector<8x4xf32>
    %136 = tpu.transpose %134, [1, 0] : vector<8x4xf32> -> vector<4x8xf32>
    %cst_51 = arith.constant dense<0.000000e+00> : vector<8x8xf32>
    %137 = tpu.matmul %133, %136, %cst_51 {dimension_numbers = #tpu.dot_dimension_numbers<[1], [0], [0], [1], [0, 0, 1, 1], [], []>} : vector<8x4xf32>, vector<4x8xf32>, vector<8x8xf32> -> vector<8x8xf32>
    %cst_52 = arith.constant dense<0xFF800000> : vector<8xf32>
    %138 = vector.multi_reduction <maximumf>, %137, %cst_52 [1] : vector<8x8xf32> to vector<8xf32>
    %139 = vector.shape_cast %138 : vector<8xf32> to vector<8x1xf32>
    %140 = vector.broadcast %139 : vector<8x1xf32> to vector<8x8xf32>
    %141 = arith.subf %137, %140 : vector<8x8xf32>
    %142 = math.exp %141 : vector<8x8xf32>
    %cst_53 = arith.constant dense<0.000000e+00> : vector<8xf32>
    %143 = vector.multi_reduction <add>, %142, %cst_53 [1] : vector<8x8xf32> to vector<8xf32>
    %144 = vector.shape_cast %143 : vector<8xf32> to vector<8x1xf32>
    %145 = tpu.reciprocal %144 {approx = true} : vector<8x1xf32> -> vector<8x1xf32>
    %146 = vector.broadcast %145 : vector<8x1xf32> to vector<8x8xf32>
    %147 = arith.mulf %142, %146 : vector<8x8xf32>
    %cst_54 = arith.constant dense<0.000000e+00> : vector<8x4xf32>
    %148 = tpu.matmul %147, %135, %cst_54 {dimension_numbers = #tpu.dot_dimension_numbers<[1], [0], [0], [1], [0, 0, 1, 1], [], []>} : vector<8x8xf32>, vector<8x4xf32>, vector<8x4xf32> -> vector<8x4xf32>
    %149 = tpu.concatenate %132, %148 in 1 : vector<8x4xf32>, vector<8x4xf32> -> vector<8x8xf32>
    %150 = vector.extract_strided_slice %115 {offsets = [8, 0], sizes = [8, 4], strides = [1, 1]} : vector<16x8xf32> to vector<8x4xf32>
    %151 = vector.extract_strided_slice %116 {offsets = [8, 0], sizes = [8, 4], strides = [1, 1]} : vector<16x8xf32> to vector<8x4xf32>
    %152 = vector.extract_strided_slice %114 {offsets = [8, 0], sizes = [8, 4], strides = [1, 1]} : vector<16x8xf32> to vector<8x4xf32>
    %153 = tpu.transpose %151, [1, 0] : vector<8x4xf32> -> vector<4x8xf32>
    %cst_55 = arith.constant dense<0.000000e+00> : vector<8x8xf32>
    %154 = tpu.matmul %150, %153, %cst_55 {dimension_numbers = #tpu.dot_dimension_numbers<[1], [0], [0], [1], [0, 0, 1, 1], [], []>} : vector<8x4xf32>, vector<4x8xf32>, vector<8x8xf32> -> vector<8x8xf32>
    %cst_56 = arith.constant dense<0xFF800000> : vector<8xf32>
    %155 = vector.multi_reduction <maximumf>, %154, %cst_56 [1] : vector<8x8xf32> to vector<8xf32>
    %156 = vector.shape_cast %155 : vector<8xf32> to vector<8x1xf32>
    %157 = vector.broadcast %156 : vector<8x1xf32> to vector<8x8xf32>
    %158 = arith.subf %154, %157 : vector<8x8xf32>
    %159 = math.exp %158 : vector<8x8xf32>
    %cst_57 = arith.constant dense<0.000000e+00> : vector<8xf32>
    %160 = vector.multi_reduction <add>, %159, %cst_57 [1] : vector<8x8xf32> to vector<8xf32>
    %161 = vector.shape_cast %160 : vector<8xf32> to vector<8x1xf32>
    %162 = tpu.reciprocal %161 {approx = true} : vector<8x1xf32> -> vector<8x1xf32>
    %163 = vector.broadcast %162 : vector<8x1xf32> to vector<8x8xf32>
    %164 = arith.mulf %159, %163 : vector<8x8xf32>
    %cst_58 = arith.constant dense<0.000000e+00> : vector<8x4xf32>
    %165 = tpu.matmul %164, %152, %cst_58 {dimension_numbers = #tpu.dot_dimension_numbers<[1], [0], [0], [1], [0, 0, 1, 1], [], []>} : vector<8x8xf32>, vector<8x4xf32>, vector<8x4xf32> -> vector<8x4xf32>
    %166 = vector.extract_strided_slice %115 {offsets = [8, 4], sizes = [8, 4], strides = [1, 1]} : vector<16x8xf32> to vector<8x4xf32>
    %167 = vector.extract_strided_slice %116 {offsets = [8, 4], sizes = [8, 4], strides = [1, 1]} : vector<16x8xf32> to vector<8x4xf32>
    %168 = vector.extract_strided_slice %114 {offsets = [8, 4], sizes = [8, 4], strides = [1, 1]} : vector<16x8xf32> to vector<8x4xf32>
    %169 = tpu.transpose %167, [1, 0] : vector<8x4xf32> -> vector<4x8xf32>
    %cst_59 = arith.constant dense<0.000000e+00> : vector<8x8xf32>
    %170 = tpu.matmul %166, %169, %cst_59 {dimension_numbers = #tpu.dot_dimension_numbers<[1], [0], [0], [1], [0, 0, 1, 1], [], []>} : vector<8x4xf32>, vector<4x8xf32>, vector<8x8xf32> -> vector<8x8xf32>
    %cst_60 = arith.constant dense<0xFF800000> : vector<8xf32>
    %171 = vector.multi_reduction <maximumf>, %170, %cst_60 [1] : vector<8x8xf32> to vector<8xf32>
    %172 = vector.shape_cast %171 : vector<8xf32> to vector<8x1xf32>
    %173 = vector.broadcast %172 : vector<8x1xf32> to vector<8x8xf32>
    %174 = arith.subf %170, %173 : vector<8x8xf32>
    %175 = math.exp %174 : vector<8x8xf32>
    %cst_61 = arith.constant dense<0.000000e+00> : vector<8xf32>
    %176 = vector.multi_reduction <add>, %175, %cst_61 [1] : vector<8x8xf32> to vector<8xf32>
    %177 = vector.shape_cast %176 : vector<8xf32> to vector<8x1xf32>
    %178 = tpu.reciprocal %177 {approx = true} : vector<8x1xf32> -> vector<8x1xf32>
    %179 = vector.broadcast %178 : vector<8x1xf32> to vector<8x8xf32>
    %180 = arith.mulf %175, %179 : vector<8x8xf32>
    %cst_62 = arith.constant dense<0.000000e+00> : vector<8x4xf32>
    %181 = tpu.matmul %180, %168, %cst_62 {dimension_numbers = #tpu.dot_dimension_numbers<[1], [0], [0], [1], [0, 0, 1, 1], [], []>} : vector<8x8xf32>, vector<8x4xf32>, vector<8x4xf32> -> vector<8x4xf32>
    %182 = tpu.concatenate %165, %181 in 1 : vector<8x4xf32>, vector<8x4xf32> -> vector<8x8xf32>
    %183 = tpu.concatenate %149, %182 in 0 : vector<8x8xf32>, vector<8x8xf32> -> vector<16x8xf32>
    %c0_63 = arith.constant 0 : index
    %c0_64 = arith.constant 0 : index
    %184 = vector.load %arg12[%c0_63, %c0_64] : memref<8x8xf32, #tpu.memory_space<vmem>>, vector<8x8xf32>
    %cst_65 = arith.constant dense<0.000000e+00> : vector<16x8xf32>
    %185 = tpu.matmul %183, %184, %cst_65 {dimension_numbers = #tpu.dot_dimension_numbers<[1], [0], [0], [1], [0, 0, 1, 1], [], []>} : vector<16x8xf32>, vector<8x8xf32>, vector<16x8xf32> -> vector<16x8xf32>
    %c0_66 = arith.constant 0 : index
    %c0_67 = arith.constant 0 : index
    %186 = vector.load %arg13[%c0_66, %c0_67] : memref<1x8xf32, #tpu.memory_space<vmem>>, vector<1x8xf32>
    %187 = vector.broadcast %186 : vector<1x8xf32> to vector<16x8xf32>
    %188 = arith.addf %185, %187 : vector<16x8xf32>
    %189 = arith.addf %104, %188 : vector<16x8xf32>
    %c0_68 = arith.constant 0 : index
    %c0_69 = arith.constant 0 : index
    %190 = vector.load %arg14[%c0_68, %c0_69] : memref<1x8xf32, #tpu.memory_space<vmem>>, vector<1x8xf32>
    %c0_70 = arith.constant 0 : index
    %c0_71 = arith.constant 0 : index
    %191 = vector.load %arg15[%c0_70, %c0_71] : memref<1x8xf32, #tpu.memory_space<vmem>>, vector<1x8xf32>
    %cst_72 = arith.constant dense<0.000000e+00> : vector<16xf32>
    %192 = vector.multi_reduction <add>, %189, %cst_72 [1] : vector<16x8xf32> to vector<16xf32>
    %193 = vector.shape_cast %192 : vector<16xf32> to vector<16x1xf32>
    %cst_73 = arith.constant 8.000000e+00 : f32
    %194 = vector.broadcast %cst_73 : f32 to vector<16x1xf32>
    %195 = arith.divf %193, %194 : vector<16x1xf32>
    %196 = vector.broadcast %195 : vector<16x1xf32> to vector<16x8xf32>
    %197 = arith.subf %189, %196 : vector<16x8xf32>
    %198 = arith.mulf %197, %197 : vector<16x8xf32>
    %cst_74 = arith.constant dense<0.000000e+00> : vector<16xf32>
    %199 = vector.multi_reduction <add>, %198, %cst_74 [1] : vector<16x8xf32> to vector<16xf32>
    %200 = vector.shape_cast %199 : vector<16xf32> to vector<16x1xf32>
    %cst_75 = arith.constant 8.000000e+00 : f32
    %201 = vector.broadcast %cst_75 : f32 to vector<16x1xf32>
    %202 = arith.divf %200, %201 : vector<16x1xf32>
    %cst_76 = arith.constant 9.99999974E-6 : f32
    %203 = vector.broadcast %cst_76 : f32 to vector<16x1xf32>
    %204 = arith.addf %202, %203 : vector<16x1xf32>
    %205 = math.rsqrt %204 : vector<16x1xf32>
    %206 = vector.broadcast %205 : vector<16x1xf32> to vector<16x8xf32>
    %207 = arith.mulf %197, %206 : vector<16x8xf32>
    %208 = vector.broadcast %190 : vector<1x8xf32> to vector<16x8xf32>
    %209 = arith.mulf %207, %208 : vector<16x8xf32>
    %210 = vector.broadcast %191 : vector<1x8xf32> to vector<16x8xf32>
    %211 = arith.addf %209, %210 : vector<16x8xf32>
    %c0_77 = arith.constant 0 : index
    %c0_78 = arith.constant 0 : index
    %212 = vector.load %arg16[%c0_77, %c0_78] : memref<8x64xf32, #tpu.memory_space<vmem>>, vector<8x64xf32>
    %cst_79 = arith.constant dense<0.000000e+00> : vector<16x64xf32>
    %213 = tpu.matmul %211, %212, %cst_79 {dimension_numbers = #tpu.dot_dimension_numbers<[1], [0], [0], [1], [0, 0, 1, 1], [], []>} : vector<16x8xf32>, vector<8x64xf32>, vector<16x64xf32> -> vector<16x64xf32>
    %c0_80 = arith.constant 0 : index
    %c0_81 = arith.constant 0 : index
    %214 = vector.load %arg17[%c0_80, %c0_81] : memref<1x64xf32, #tpu.memory_space<vmem>>, vector<1x64xf32>
    %215 = vector.broadcast %214 : vector<1x64xf32> to vector<16x64xf32>
    %216 = arith.addf %213, %215 : vector<16x64xf32>
    %cst_82 = arith.constant 0.000000e+00 : f32
    %217 = vector.broadcast %cst_82 : f32 to vector<16x64xf32>
    %218 = arith.maximumf %216, %217 : vector<16x64xf32>
    %c0_83 = arith.constant 0 : index
    %c0_84 = arith.constant 0 : index
    %219 = vector.load %arg18[%c0_83, %c0_84] : memref<64x8xf32, #tpu.memory_space<vmem>>, vector<64x8xf32>
    %cst_85 = arith.constant dense<0.000000e+00> : vector<16x8xf32>
    %220 = tpu.matmul %218, %219, %cst_85 {dimension_numbers = #tpu.dot_dimension_numbers<[1], [0], [0], [1], [0, 0, 1, 1], [], []>} : vector<16x64xf32>, vector<64x8xf32>, vector<16x8xf32> -> vector<16x8xf32>
    %c0_86 = arith.constant 0 : index
    %c0_87 = arith.constant 0 : index
    %221 = vector.load %arg19[%c0_86, %c0_87] : memref<1x8xf32, #tpu.memory_space<vmem>>, vector<1x8xf32>
    %222 = vector.broadcast %221 : vector<1x8xf32> to vector<16x8xf32>
    %223 = arith.addf %220, %222 : vector<16x8xf32>
    %224 = arith.addf %211, %223 : vector<16x8xf32>
    %c0_88 = arith.constant 0 : index
    %c0_89 = arith.constant 0 : index
    %225 = vector.load %arg20[%c0_88, %c0_89] : memref<1x8xf32, #tpu.memory_space<vmem>>, vector<1x8xf32>
    %c0_90 = arith.constant 0 : index
    %c0_91 = arith.constant 0 : index
    %226 = vector.load %arg21[%c0_90, %c0_91] : memref<1x8xf32, #tpu.memory_space<vmem>>, vector<1x8xf32>
    %cst_92 = arith.constant dense<0.000000e+00> : vector<16xf32>
    %227 = vector.multi_reduction <add>, %224, %cst_92 [1] : vector<16x8xf32> to vector<16xf32>
    %228 = vector.shape_cast %227 : vector<16xf32> to vector<16x1xf32>
    %cst_93 = arith.constant 8.000000e+00 : f32
    %229 = vector.broadcast %cst_93 : f32 to vector<16x1xf32>
    %230 = arith.divf %228, %229 : vector<16x1xf32>
    %231 = vector.broadcast %230 : vector<16x1xf32> to vector<16x8xf32>
    %232 = arith.subf %224, %231 : vector<16x8xf32>
    %233 = arith.mulf %232, %232 : vector<16x8xf32>
    %cst_94 = arith.constant dense<0.000000e+00> : vector<16xf32>
    %234 = vector.multi_reduction <add>, %233, %cst_94 [1] : vector<16x8xf32> to vector<16xf32>
    %235 = vector.shape_cast %234 : vector<16xf32> to vector<16x1xf32>
    %cst_95 = arith.constant 8.000000e+00 : f32
    %236 = vector.broadcast %cst_95 : f32 to vector<16x1xf32>
    %237 = arith.divf %235, %236 : vector<16x1xf32>
    %cst_96 = arith.constant 9.99999974E-6 : f32
    %238 = vector.broadcast %cst_96 : f32 to vector<16x1xf32>
    %239 = arith.addf %237, %238 : vector<16x1xf32>
    %240 = math.rsqrt %239 : vector<16x1xf32>
    %241 = vector.broadcast %240 : vector<16x1xf32> to vector<16x8xf32>
    %242 = arith.mulf %232, %241 : vector<16x8xf32>
    %243 = vector.broadcast %225 : vector<1x8xf32> to vector<16x8xf32>
    %244 = arith.mulf %242, %243 : vector<16x8xf32>
    %245 = vector.broadcast %226 : vector<1x8xf32> to vector<16x8xf32>
    %246 = arith.addf %244, %245 : vector<16x8xf32>
    %c0_97 = arith.constant 0 : index
    %c0_98 = arith.constant 0 : index
    %247 = vector.load %arg22[%c0_97, %c0_98] : memref<16x8xf32, #tpu.memory_space<vmem>>, vector<16x8xf32>
    tpu.vector_store %arg22[%c0_97, %c0_98], %246 {strides = array<i32>} : memref<16x8xf32, #tpu.memory_space<vmem>>, vector<16x8xf32>,
    return
  }
}

</mosaic_0001>

<llo_original>
// kernel: tpu_custom_call.1
$region0: #{tpu_custom_call.1}
  #allocation0 [shape = 'u32[]', space=smem, size = 0x4, offset = 0x4, fixed_abs, tag = 'smem constant byte address 0x4 - core index']
  #allocation1 [shape = 'u32[72,128]{1,0:T(1,128)}', space=vmem, size = 0x9000, scoped, tag = 'internal scratch']
  %s0 = inlined_call_operand.vmem [shape: f32[16,8], index: 0, kind: input, shape index: {}]
  %s1 = inlined_call_operand.vmem [shape: f32[16,8], index: 1, kind: input, shape index: {}]
  %s2 = inlined_call_operand.vmem [shape: f32[8,24], index: 2, kind: input, shape index: {}]
  %s3 = inlined_call_operand.vmem [shape: f32[1,24], index: 3, kind: input, shape index: {}]
  %s4 = inlined_call_operand.vmem [shape: f32[8,8], index: 4, kind: input, shape index: {}]
  %s5 = inlined_call_operand.vmem [shape: f32[1,8], index: 5, kind: input, shape index: {}]
  %s6 = inlined_call_operand.vmem [shape: f32[1,8], index: 6, kind: input, shape index: {}]
  %s7 = inlined_call_operand.vmem [shape: f32[1,8], index: 7, kind: input, shape index: {}]
  %s8 = inlined_call_operand.vmem [shape: f32[8,16], index: 8, kind: input, shape index: {}]
  %s9 = inlined_call_operand.vmem [shape: f32[1,16], index: 9, kind: input, shape index: {}]
  %s10 = inlined_call_operand.vmem [shape: f32[8,8], index: 10, kind: input, shape index: {}]
  %s11 = inlined_call_operand.vmem [shape: f32[1,8], index: 11, kind: input, shape index: {}]
  %s12 = inlined_call_operand.vmem [shape: f32[8,8], index: 12, kind: input, shape index: {}]
  %s13 = inlined_call_operand.vmem [shape: f32[1,8], index: 13, kind: input, shape index: {}]
  %s14 = inlined_call_operand.vmem [shape: f32[1,8], index: 14, kind: input, shape index: {}]
  %s15 = inlined_call_operand.vmem [shape: f32[1,8], index: 15, kind: input, shape index: {}]
  %s16 = inlined_call_operand.vmem [shape: f32[8,64], index: 16, kind: input, shape index: {}]
  %s17 = inlined_call_operand.vmem [shape: f32[1,64], index: 17, kind: input, shape index: {}]
  %s18 = inlined_call_operand.vmem [shape: f32[64,8], index: 18, kind: input, shape index: {}]
  %s19 = inlined_call_operand.vmem [shape: f32[1,8], index: 19, kind: input, shape index: {}]
  %s20 = inlined_call_operand.vmem [shape: f32[1,8], index: 20, kind: input, shape index: {}]
  %s21 = inlined_call_operand.vmem [shape: f32[1,8], index: 21, kind: input, shape index: {}]
  %s22 = inlined_call_operand.vmem [shape: f32[16,8], index: 22, kind: output, shape index: {}]
  %s23 = sld [smem:[#allocation0]]
  $region98: #{tpu_custom_call.1} parent=0
    _
  %s25 = ssub.s32 1, %s23
  %s26 = scalar_select 0, %s25, %s23
  // Predicated region
  $region2: #{tpu_custom_call.1} parent=0 // pred_check
    _
  $region3: #{tpu_custom_call.1} parent=0 // pred_check_branch
    %28 = sbr.rel (0) target = $region5
  $region4: #{tpu_custom_call.1} parent=0 // pred_region
    _
  $region5: #{tpu_custom_call.1} parent=0 // pred_fallthru
    _
  // Predicated region
  $region6: #{tpu_custom_call.1} parent=0 // pred_check
    _
  $region7: #{tpu_custom_call.1} parent=0 // pred_check_branch
    %30 = sbr.rel (0) target = $region9
  $region8: #{tpu_custom_call.1} parent=0 // pred_region
    _
  $region9: #{tpu_custom_call.1} parent=0 // pred_fallthru
    _
  // Predicated region
  $region10: #{tpu_custom_call.1} parent=0 // pred_check
    _
  $region11: #{tpu_custom_call.1} parent=0 // pred_check_branch
    %32 = sbr.rel (0) target = $region13
  $region12: #{tpu_custom_call.1} parent=0 // pred_region
    _
  $region13: #{tpu_custom_call.1} parent=0 // pred_fallthru
    _
  // Predicated region
  $region14: #{tpu_custom_call.1} parent=0 // pred_check
    _
  $region15: #{tpu_custom_call.1} parent=0 // pred_check_branch
    %34 = sbr.rel (0) target = $region17
  $region16: #{tpu_custom_call.1} parent=0 // pred_region
    _
  $region17: #{tpu_custom_call.1} parent=0 // pred_fallthru
    _
  // Predicated region
  $region18: #{tpu_custom_call.1} parent=0 // pred_check
    _
  $region19: #{tpu_custom_call.1} parent=0 // pred_check_branch
    %36 = sbr.rel (0) target = $region21
  $region20: #{tpu_custom_call.1} parent=0 // pred_region
    _
  $region21: #{tpu_custom_call.1} parent=0 // pred_fallthru
    _
  // Predicated region
  $region22: #{tpu_custom_call.1} parent=0 // pred_check
    _
  $region23: #{tpu_custom_call.1} parent=0 // pred_check_branch
    %38 = sbr.rel (0) target = $region25
  $region24: #{tpu_custom_call.1} parent=0 // pred_region
    _
  $region25: #{tpu_custom_call.1} parent=0 // pred_fallthru
    _
  // Predicated region
  $region26: #{tpu_custom_call.1} parent=0 // pred_check
    _
  $region27: #{tpu_custom_call.1} parent=0 // pred_check_branch
    %40 = sbr.rel (0) target = $region29
  $region28: #{tpu_custom_call.1} parent=0 // pred_region
    _
  $region29: #{tpu_custom_call.1} parent=0 // pred_fallthru
    _
  // Predicated region
  $region30: #{tpu_custom_call.1} parent=0 // pred_check
    _
  $region31: #{tpu_custom_call.1} parent=0 // pred_check_branch
    %42 = sbr.rel (0) target = $region33
  $region32: #{tpu_custom_call.1} parent=0 // pred_region
    _
  $region33: #{tpu_custom_call.1} parent=0 // pred_fallthru
    _
  // Predicated region
  $region34: #{tpu_custom_call.1} parent=0 // pred_check
    _
  $region35: #{tpu_custom_call.1} parent=0 // pred_check_branch
    %44 = sbr.rel (0) target = $region37
  $region36: #{tpu_custom_call.1} parent=0 // pred_region
    _
  $region37: #{tpu_custom_call.1} parent=0 // pred_fallthru
    _
  // Predicated region
  $region38: #{tpu_custom_call.1} parent=0 // pred_check
    _
  $region39: #{tpu_custom_call.1} parent=0 // pred_check_branch
    %46 = sbr.rel (0) target = $region41
  $region40: #{tpu_custom_call.1} parent=0 // pred_region
    _
  $region41: #{tpu_custom_call.1} parent=0 // pred_fallthru
    _
  // Predicated region
  $region42: #{tpu_custom_call.1} parent=0 // pred_check
    _
  $region43: #{tpu_custom_call.1} parent=0 // pred_check_branch
    %48 = sbr.rel (0) target = $region45
  $region44: #{tpu_custom_call.1} parent=0 // pred_region
    _
  $region45: #{tpu_custom_call.1} parent=0 // pred_fallthru
    _
  // Predicated region
  $region46: #{tpu_custom_call.1} parent=0 // pred_check
    _
  $region47: #{tpu_custom_call.1} parent=0 // pred_check_branch
    %50 = sbr.rel (0) target = $region49
  $region48: #{tpu_custom_call.1} parent=0 // pred_region
    _
  $region49: #{tpu_custom_call.1} parent=0 // pred_fallthru
    _
  // Predicated region
  $region50: #{tpu_custom_call.1} parent=0 // pred_check
    _
  $region51: #{tpu_custom_call.1} parent=0 // pred_check_branch
    %52 = sbr.rel (0) target = $region53
  $region52: #{tpu_custom_call.1} parent=0 // pred_region
    _
  $region53: #{tpu_custom_call.1} parent=0 // pred_fallthru
    _
  // Predicated region
  $region54: #{tpu_custom_call.1} parent=0 // pred_check
    _
  $region55: #{tpu_custom_call.1} parent=0 // pred_check_branch
    %54 = sbr.rel (0) target = $region57
  $region56: #{tpu_custom_call.1} parent=0 // pred_region
    _
  $region57: #{tpu_custom_call.1} parent=0 // pred_fallthru
    _
  // Predicated region
  $region58: #{tpu_custom_call.1} parent=0 // pred_check
    _
  $region59: #{tpu_custom_call.1} parent=0 // pred_check_branch
    %56 = sbr.rel (0) target = $region61
  $region60: #{tpu_custom_call.1} parent=0 // pred_region
    _
  $region61: #{tpu_custom_call.1} parent=0 // pred_fallthru
    _
  // Predicated region
  $region62: #{tpu_custom_call.1} parent=0 // pred_check
    _
  $region63: #{tpu_custom_call.1} parent=0 // pred_check_branch
    %58 = sbr.rel (0) target = $region65
  $region64: #{tpu_custom_call.1} parent=0 // pred_region
    _
  $region65: #{tpu_custom_call.1} parent=0 // pred_fallthru
    _
  // Predicated region
  $region66: #{tpu_custom_call.1} parent=0 // pred_check
    _
  $region67: #{tpu_custom_call.1} parent=0 // pred_check_branch
    %60 = sbr.rel (0) target = $region69
  $region68: #{tpu_custom_call.1} parent=0 // pred_region
    _
  $region69: #{tpu_custom_call.1} parent=0 // pred_fallthru
    _
  // Predicated region
  $region70: #{tpu_custom_call.1} parent=0 // pred_check
    _
  $region71: #{tpu_custom_call.1} parent=0 // pred_check_branch
    %62 = sbr.rel (0) target = $region73
  $region72: #{tpu_custom_call.1} parent=0 // pred_region
    _
  $region73: #{tpu_custom_call.1} parent=0 // pred_fallthru
    _
  // Predicated region
  $region74: #{tpu_custom_call.1} parent=0 // pred_check
    _
  $region75: #{tpu_custom_call.1} parent=0 // pred_check_branch
    %64 = sbr.rel (0) target = $region77
  $region76: #{tpu_custom_call.1} parent=0 // pred_region
    _
  $region77: #{tpu_custom_call.1} parent=0 // pred_fallthru
    _
  // Predicated region
  $region78: #{tpu_custom_call.1} parent=0 // pred_check
    _
  $region79: #{tpu_custom_call.1} parent=0 // pred_check_branch
    %66 = sbr.rel (0) target = $region81
  $region80: #{tpu_custom_call.1} parent=0 // pred_region
    _
  $region81: #{tpu_custom_call.1} parent=0 // pred_fallthru
    _
  // Predicated region
  $region82: #{tpu_custom_call.1} parent=0 // pred_check
    _
  $region83: #{tpu_custom_call.1} parent=0 // pred_check_branch
    %68 = sbr.rel (0) target = $region85
  $region84: #{tpu_custom_call.1} parent=0 // pred_region
    _
  $region85: #{tpu_custom_call.1} parent=0 // pred_fallthru
    _
  // Predicated region
  $region86: #{tpu_custom_call.1} parent=0 // pred_check
    _
  $region87: #{tpu_custom_call.1} parent=0 // pred_check_branch
    %70 = sbr.rel (0) target = $region89
  $region88: #{tpu_custom_call.1} parent=0 // pred_region
    _
  $region89: #{tpu_custom_call.1} parent=0 // pred_fallthru
    _
  %v71 = vld [vmem:[%s0] sm:$0xff]
  %v72 = vld [vmem:[%s0 + $0x8] sm:$0xff]
  %v73 = vld [vmem:[%s1] sm:$0xff]
  %v74 = vld [vmem:[%s1 + $0x8] sm:$0xff]
  %v75 = vld [vmem:[%s2] sm:$0xff]
  %v76 = vld [vmem:[%s3] sm:$0x1]
  %v78 = vperm.slane %v76, 0
  %vm80 = vcmask 64512
  %v82 = vsel %vm80, %v71, 0
  %v85 = vsel %vm80, %v72, 0
  %87 = vmatpush.msra.mxu0 0.0
  %88 = vmatpush.msra.mxu0 0.0
  %89 = vmatpush.msra.mxu0 0.0
  %90 = vmatpush.msra.mxu0 0.0
  %91 = vmatpush.msra.mxu0 0.0
  %92 = vmatpush.msra.mxu0 0.0
  %93 = vmatpush.msra.mxu0 0.0
  %94 = vmatpush.msra.mxu0 0.0
  %95 = vmatpush.msra.mxu0 0.0
  %96 = vmatpush.msra.mxu0 0.0
  %97 = vmatpush.msra.mxu0 0.0
  %98 = vmatpush.msra.mxu0 0.0
  %99 = vmatpush.msra.mxu0 0.0
  %100 = vmatpush.msra.mxu0 0.0
  %101 = vmatpush.msra.mxu0 0.0
  %102 = vmatpush.msra.mxu0 %v75
  %103 = vmatmul.f32.gmra.mxu0 %v82
  %v104 = vpop.f32.mrf.mxu0
  %v105 = vadd.f32 %v78, %v104
  %106 = vmatmul.f32.gmra.mxu0 %v85
  %v107 = vpop.f32.mrf.mxu0
  %v108 = vadd.f32 %v78, %v107
  %109 = vdwg.mxu0
  %111 = vrot.lane.b32.xlu0 %v105, 120
  %v112 = vpop.permute.xlu0 %111
  %vm113 = vcmask 31744
  %v114 = vsel %vm113, %v105, 0
  %v116 = vsel %vm113, %v112, 0
  %118 = vmatpush.xpose.msra.mxu0 0.0
  %119 = vmatpush.xpose.msra.mxu0 0.0
  %120 = vmatpush.xpose.msra.mxu0 0.0
  %121 = vmatpush.xpose.msra.mxu0 0.0
  %122 = vmatpush.xpose.msra.mxu0 0.0
  %123 = vmatpush.xpose.msra.mxu0 0.0
  %124 = vmatpush.xpose.msra.mxu0 0.0
  %125 = vmatpush.xpose.msra.mxu0 0.0
  %126 = vmatpush.xpose.msra.mxu0 0.0
  %127 = vmatpush.xpose.msra.mxu0 0.0
  %128 = vmatpush.xpose.msra.mxu0 0.0
  %129 = vmatpush.xpose.msra.mxu0 0.0
  %130 = vmatpush.xpose.msra.mxu0 0.0
  %131 = vmatpush.xpose.msra.mxu0 0.0
  %132 = vmatpush.xpose.msra.mxu0 0.0
  %133 = vmatpush.xpose.msra.mxu0 %v116
  %134 = vmatmul.f32.gmra.mxu0 %v114
  %v135 = vpop.f32.mrf.mxu0
  %v136 = vadd.f32 0.0, %v135
  %137 = vdwg.mxu0
  %v138 = vsel %vm80, %v136, -inf
  %139 = vmax.xlane.f32.xlu0 %v138
  %v140 = vpop.xlane.xlu0 %139
  %v141 = vsub.f32 %v136, %v140
  %v142 = vmul.f32 %v141, 1.442695
  %v143 = vpow.pop %v142
  %v144 = vsel %vm80, %v143, 0.0
  %145 = vadd.xlane.f32.xlu0 %v144
  %v146 = vpop.xlane.xlu0 %145
  %v147 = vrcp.pop %v146
  %v148 = vmul.f32 %v143, %v147
  %149 = vrot.lane.b32.xlu0 %v105, 112
  %v150 = vpop.permute.xlu0 %149
  %v153 = vsel %vm80, %v148, 0
  %155 = vmatpush.msra.mxu0 0.0
  %156 = vmatpush.msra.mxu0 0.0
  %157 = vmatpush.msra.mxu0 0.0
  %158 = vmatpush.msra.mxu0 0.0
  %159 = vmatpush.msra.mxu0 0.0
  %160 = vmatpush.msra.mxu0 0.0
  %161 = vmatpush.msra.mxu0 0.0
  %162 = vmatpush.msra.mxu0 0.0
  %163 = vmatpush.msra.mxu0 0.0
  %164 = vmatpush.msra.mxu0 0.0
  %165 = vmatpush.msra.mxu0 0.0
  %166 = vmatpush.msra.mxu0 0.0
  %167 = vmatpush.msra.mxu0 0.0
  %168 = vmatpush.msra.mxu0 0.0
  %169 = vmatpush.msra.mxu0 0.0
  %170 = vmatpush.msra.mxu0 %v150
  %171 = vmatmul.f32.gmra.mxu0 %v153
  %v172 = vpop.f32.mrf.mxu0
  %v173 = vadd.f32 0.0, %v172
  %174 = vdwg.mxu0
  %175 = vrot.lane.b32.xlu0 %v105, 124
  %v176 = vpop.permute.xlu0 %175
  %177 = vrot.lane.b32.xlu0 %v105, 116
  %v178 = vpop.permute.xlu0 %177
  %v179 = vsel %vm113, %v176, 0
  %v181 = vsel %vm113, %v178, 0
  %183 = vmatpush.xpose.msra.mxu0 0.0
  %184 = vmatpush.xpose.msra.mxu0 0.0
  %185 = vmatpush.xpose.msra.mxu0 0.0
  %186 = vmatpush.xpose.msra.mxu0 0.0
  %187 = vmatpush.xpose.msra.mxu0 0.0
  %188 = vmatpush.xpose.msra.mxu0 0.0
  %189 = vmatpush.xpose.msra.mxu0 0.0
  %190 = vmatpush.xpose.msra.mxu0 0.0
  %191 = vmatpush.xpose.msra.mxu0 0.0
  %192 = vmatpush.xpose.msra.mxu0 0.0
  %193 = vmatpush.xpose.msra.mxu0 0.0
  %194 = vmatpush.xpose.msra.mxu0 0.0
  %195 = vmatpush.xpose.msra.mxu0 0.0
  %196 = vmatpush.xpose.msra.mxu0 0.0
  %197 = vmatpush.xpose.msra.mxu0 0.0
  %198 = vmatpush.xpose.msra.mxu0 %v181
  %199 = vmatmul.f32.gmra.mxu0 %v179
  %v200 = vpop.f32.mrf.mxu0
  %v201 = vadd.f32 0.0, %v200
  %202 = vdwg.mxu0
  %v203 = vsel %vm80, %v201, -inf
  %204 = vmax.xlane.f32.xlu0 %v203
  %v205 = vpop.xlane.xlu0 %204
  %v206 = vsub.f32 %v201, %v205
  %v207 = vmul.f32 %v206, 1.442695
  %v208 = vpow.pop %v207
  %v209 = vsel %vm80, %v208, 0.0
  %210 = vadd.xlane.f32.xlu0 %v209
  %v211 = vpop.xlane.xlu0 %210
  %v212 = vrcp.pop %v211
  %v213 = vmul.f32 %v208, %v212
  %214 = vrot.lane.b32.xlu0 %v105, 108
  %v215 = vpop.permute.xlu0 %214
  %v218 = vsel %vm80, %v213, 0
  %220 = vmatpush.msra.mxu0 0.0
  %221 = vmatpush.msra.mxu0 0.0
  %222 = vmatpush.msra.mxu0 0.0
  %223 = vmatpush.msra.mxu0 0.0
  %224 = vmatpush.msra.mxu0 0.0
  %225 = vmatpush.msra.mxu0 0.0
  %226 = vmatpush.msra.mxu0 0.0
  %227 = vmatpush.msra.mxu0 0.0
  %228 = vmatpush.msra.mxu0 0.0
  %229 = vmatpush.msra.mxu0 0.0
  %230 = vmatpush.msra.mxu0 0.0
  %231 = vmatpush.msra.mxu0 0.0
  %232 = vmatpush.msra.mxu0 0.0
  %233 = vmatpush.msra.mxu0 0.0
  %234 = vmatpush.msra.mxu0 0.0
  %235 = vmatpush.msra.mxu0 %v215
  %236 = vmatmul.f32.gmra.mxu0 %v218
  %v237 = vpop.f32.mrf.mxu0
  %v238 = vadd.f32 0.0, %v237
  %239 = vdwg.mxu0
  %241 = vrot.lane.b32.xlu0 %v238, 4
  %v242 = vpop.permute.xlu0 %241
  %v244 = vsel %vm113, %v173, %v242
  %246 = vrot.lane.b32.xlu0 %v108, 120
  %v247 = vpop.permute.xlu0 %246
  %v248 = vsel %vm113, %v108, 0
  %v250 = vsel %vm113, %v247, 0
  %252 = vmatpush.xpose.msra.mxu0 0.0
  %253 = vmatpush.xpose.msra.mxu0 0.0
  %254 = vmatpush.xpose.msra.mxu0 0.0
  %255 = vmatpush.xpose.msra.mxu0 0.0
  %256 = vmatpush.xpose.msra.mxu0 0.0
  %257 = vmatpush.xpose.msra.mxu0 0.0
  %258 = vmatpush.xpose.msra.mxu0 0.0
  %259 = vmatpush.xpose.msra.mxu0 0.0
  %260 = vmatpush.xpose.msra.mxu0 0.0
  %261 = vmatpush.xpose.msra.mxu0 0.0
  %262 = vmatpush.xpose.msra.mxu0 0.0
  %263 = vmatpush.xpose.msra.mxu0 0.0
  %264 = vmatpush.xpose.msra.mxu0 0.0
  %265 = vmatpush.xpose.msra.mxu0 0.0
  %266 = vmatpush.xpose.msra.mxu0 0.0
  %267 = vmatpush.xpose.msra.mxu0 %v250
  %268 = vmatmul.f32.gmra.mxu0 %v248
  %v269 = vpop.f32.mrf.mxu0
  %v270 = vadd.f32 0.0, %v269
  %271 = vdwg.mxu0
  %v272 = vsel %vm80, %v270, -inf
  %273 = vmax.xlane.f32.xlu0 %v272
  %v274 = vpop.xlane.xlu0 %273
  %v275 = vsub.f32 %v270, %v274
  %v276 = vmul.f32 %v275, 1.442695
  %v277 = vpow.pop %v276
  %v278 = vsel %vm80, %v277, 0.0
  %279 = vadd.xlane.f32.xlu0 %v278
  %v280 = vpop.xlane.xlu0 %279
  %v281 = vrcp.pop %v280
  %v282 = vmul.f32 %v277, %v281
  %283 = vrot.lane.b32.xlu0 %v108, 112
  %v284 = vpop.permute.xlu0 %283
  %v287 = vsel %vm80, %v282, 0
  %289 = vmatpush.msra.mxu0 0.0
  %290 = vmatpush.msra.mxu0 0.0
  %291 = vmatpush.msra.mxu0 0.0
  %292 = vmatpush.msra.mxu0 0.0
  %293 = vmatpush.msra.mxu0 0.0
  %294 = vmatpush.msra.mxu0 0.0
  %295 = vmatpush.msra.mxu0 0.0
  %296 = vmatpush.msra.mxu0 0.0
  %297 = vmatpush.msra.mxu0 0.0
  %298 = vmatpush.msra.mxu0 0.0
  %299 = vmatpush.msra.mxu0 0.0
  %300 = vmatpush.msra.mxu0 0.0
  %301 = vmatpush.msra.mxu0 0.0
  %302 = vmatpush.msra.mxu0 0.0
  %303 = vmatpush.msra.mxu0 0.0
  %304 = vmatpush.msra.mxu0 %v284
  %305 = vmatmul.f32.gmra.mxu0 %v287
  %v306 = vpop.f32.mrf.mxu0
  %v307 = vadd.f32 0.0, %v306
  %308 = vdwg.mxu0
  %309 = vrot.lane.b32.xlu0 %v108, 124
  %v310 = vpop.permute.xlu0 %309
  %311 = vrot.lane.b32.xlu0 %v108, 116
  %v312 = vpop.permute.xlu0 %311
  %v313 = vsel %vm113, %v310, 0
  %v315 = vsel %vm113, %v312, 0
  %317 = vmatpush.xpose.msra.mxu0 0.0
  %318 = vmatpush.xpose.msra.mxu0 0.0
  %319 = vmatpush.xpose.msra.mxu0 0.0
  %320 = vmatpush.xpose.msra.mxu0 0.0
  %321 = vmatpush.xpose.msra.mxu0 0.0
  %322 = vmatpush.xpose.msra.mxu0 0.0
  %323 = vmatpush.xpose.msra.mxu0 0.0
  %324 = vmatpush.xpose.msra.mxu0 0.0
  %325 = vmatpush.xpose.msra.mxu0 0.0
  %326 = vmatpush.xpose.msra.mxu0 0.0
  %327 = vmatpush.xpose.msra.mxu0 0.0
  %328 = vmatpush.xpose.msra.mxu0 0.0
  %329 = vmatpush.xpose.msra.mxu0 0.0
  %330 = vmatpush.xpose.msra.mxu0 0.0
  %331 = vmatpush.xpose.msra.mxu0 0.0
  %332 = vmatpush.xpose.msra.mxu0 %v315
  %333 = vmatmul.f32.gmra.mxu0 %v313
  %v334 = vpop.f32.mrf.mxu0
  %v335 = vadd.f32 0.0, %v334
  %336 = vdwg.mxu0
  %v337 = vsel %vm80, %v335, -inf
  %338 = vmax.xlane.f32.xlu0 %v337
  %v339 = vpop.xlane.xlu0 %338
  %v340 = vsub.f32 %v335, %v339
  %v341 = vmul.f32 %v340, 1.442695
  %v342 = vpow.pop %v341
  %v343 = vsel %vm80, %v342, 0.0
  %344 = vadd.xlane.f32.xlu0 %v343
  %v345 = vpop.xlane.xlu0 %344
  %v346 = vrcp.pop %v345
  %v347 = vmul.f32 %v342, %v346
  %348 = vrot.lane.b32.xlu0 %v108, 108
  %v349 = vpop.permute.xlu0 %348
  %v352 = vsel %vm80, %v347, 0
  %354 = vmatpush.msra.mxu0 0.0
  %355 = vmatpush.msra.mxu0 0.0
  %356 = vmatpush.msra.mxu0 0.0
  %357 = vmatpush.msra.mxu0 0.0
  %358 = vmatpush.msra.mxu0 0.0
  %359 = vmatpush.msra.mxu0 0.0
  %360 = vmatpush.msra.mxu0 0.0
  %361 = vmatpush.msra.mxu0 0.0
  %362 = vmatpush.msra.mxu0 0.0
  %363 = vmatpush.msra.mxu0 0.0
  %364 = vmatpush.msra.mxu0 0.0
  %365 = vmatpush.msra.mxu0 0.0
  %366 = vmatpush.msra.mxu0 0.0
  %367 = vmatpush.msra.mxu0 0.0
  %368 = vmatpush.msra.mxu0 0.0
  %369 = vmatpush.msra.mxu0 %v349
  %370 = vmatmul.f32.gmra.mxu0 %v352
  %v371 = vpop.f32.mrf.mxu0
  %v372 = vadd.f32 0.0, %v371
  %373 = vdwg.mxu0
  %375 = vrot.lane.b32.xlu0 %v372, 4
  %v376 = vpop.permute.xlu0 %375
  %v378 = vsel %vm113, %v307, %v376
  %v379 = vld [vmem:[%s4] sm:$0xff]
  %v380 = vld [vmem:[%s5] sm:$0x1]
  %v382 = vperm.slane %v380, 0
  %v385 = vsel %vm80, %v244, 0
  %v388 = vsel %vm80, %v378, 0
  %390 = vmatpush.msra.mxu0 0.0
  %391 = vmatpush.msra.mxu0 0.0
  %392 = vmatpush.msra.mxu0 0.0
  %393 = vmatpush.msra.mxu0 0.0
  %394 = vmatpush.msra.mxu0 0.0
  %395 = vmatpush.msra.mxu0 0.0
  %396 = vmatpush.msra.mxu0 0.0
  %397 = vmatpush.msra.mxu0 0.0
  %398 = vmatpush.msra.mxu0 0.0
  %399 = vmatpush.msra.mxu0 0.0
  %400 = vmatpush.msra.mxu0 0.0
  %401 = vmatpush.msra.mxu0 0.0
  %402 = vmatpush.msra.mxu0 0.0
  %403 = vmatpush.msra.mxu0 0.0
  %404 = vmatpush.msra.mxu0 0.0
  %405 = vmatpush.msra.mxu0 %v379
  %406 = vmatmul.f32.gmra.mxu0 %v385
  %v407 = vpop.f32.mrf.mxu0
  %v408 = vadd.f32 %v382, %v407
  %409 = vmatmul.f32.gmra.mxu0 %v388
  %v410 = vpop.f32.mrf.mxu0
  %v411 = vadd.f32 %v382, %v410
  %412 = vdwg.mxu0
  %v413 = vadd.f32 %v71, %v408
  %v414 = vadd.f32 %v72, %v411
  %v415 = vld [vmem:[%s6] sm:$0x1]
  %v416 = vld [vmem:[%s7] sm:$0x1]
  %v417 = vsel %vm80, %v413, 0.0
  %418 = vadd.xlane.f32.xlu0 %v417
  %v419 = vpop.xlane.xlu0 %418
  %v420 = vsel %vm80, %v414, 0.0
  %421 = vadd.xlane.f32.xlu0 %v420
  %v422 = vpop.xlane.xlu0 %421
  %v423 = vrcp.pop 8.0
  %v424 = vmul.f32 8.0, %v423
  %v425 = vsub.f32 1.0, %v424
  %v426 = vmul.f32 %v423, %v425
  %v427 = vadd.f32 %v423, %v426
  %vm428 = vweird.f32 %v423
  %v429 = vsel %vm428, %v423, %v427
  %v430 = vmul.f32 %v419, %v429
  %v431 = vmul.f32 %v422, %v429
  %v432 = vsub.f32 %v413, %v430
  %v433 = vsub.f32 %v414, %v431
  %v434 = vmul.f32 %v432, %v432
  %v435 = vmul.f32 %v433, %v433
  %v436 = vsel %vm80, %v434, 0.0
  %437 = vadd.xlane.f32.xlu0 %v436
  %v438 = vpop.xlane.xlu0 %437
  %v439 = vsel %vm80, %v435, 0.0
  %440 = vadd.xlane.f32.xlu0 %v439
  %v441 = vpop.xlane.xlu0 %440
  %v442 = vmul.f32 %v438, %v429
  %v443 = vmul.f32 %v441, %v429
  %v444 = vadd.f32 %v442, 1e-05
  %v445 = vadd.f32 %v443, 1e-05
  %v446 = vrsqrt.pop %v444
  %v447 = vmul.f32 %v446, %v444
  %v448 = vmul.f32 %v447, %v446
  %v449 = vmul.f32 0.5, %v448
  %v450 = vsub.f32 1.5, %v449
  %v451 = vmul.f32 %v446, %v450
  %vm452 = vweird.f32 %v444
  %vm453 = vweird.f32 %v446
  %vm454 = vmor %vm452, %vm453
  %v455 = vsel %vm454, %v446, %v451
  %v456 = vrsqrt.pop %v445
  %v457 = vmul.f32 %v456, %v445
  %v458 = vmul.f32 %v457, %v456
  %v459 = vmul.f32 0.5, %v458
  %v460 = vsub.f32 1.5, %v459
  %v461 = vmul.f32 %v456, %v460
  %vm462 = vweird.f32 %v445
  %vm463 = vweird.f32 %v456
  %vm464 = vmor %vm462, %vm463
  %v465 = vsel %vm464, %v456, %v461
  %v466 = vmul.f32 %v432, %v455
  %v467 = vmul.f32 %v433, %v465
  %v469 = vperm.slane %v415, 0
  %v471 = vmul.f32 %v466, %v469
  %v472 = vmul.f32 %v467, %v469
  %v474 = vperm.slane %v416, 0
  %v476 = vadd.f32 %v471, %v474
  %v477 = vadd.f32 %v472, %v474
  %v478 = vld [vmem:[%s8] sm:$0xff]
  %v479 = vld [vmem:[%s9] sm:$0x1]
  %v481 = vperm.slane %v479, 0
  %v484 = vsel %vm80, %v73, 0
  %v487 = vsel %vm80, %v74, 0
  %489 = vmatpush.msra.mxu0 0.0
  %490 = vmatpush.msra.mxu0 0.0
  %491 = vmatpush.msra.mxu0 0.0
  %492 = vmatpush.msra.mxu0 0.0
  %493 = vmatpush.msra.mxu0 0.0
  %494 = vmatpush.msra.mxu0 0.0
  %495 = vmatpush.msra.mxu0 0.0
  %496 = vmatpush.msra.mxu0 0.0
  %497 = vmatpush.msra.mxu0 0.0
  %498 = vmatpush.msra.mxu0 0.0
  %499 = vmatpush.msra.mxu0 0.0
  %500 = vmatpush.msra.mxu0 0.0
  %501 = vmatpush.msra.mxu0 0.0
  %502 = vmatpush.msra.mxu0 0.0
  %503 = vmatpush.msra.mxu0 0.0
  %504 = vmatpush.msra.mxu0 %v478
  %505 = vmatmul.f32.gmra.mxu0 %v484
  %v506 = vpop.f32.mrf.mxu0
  %v507 = vadd.f32 %v481, %v506
  %508 = vmatmul.f32.gmra.mxu0 %v487
  %v509 = vpop.f32.mrf.mxu0
  %v510 = vadd.f32 %v481, %v509
  %511 = vdwg.mxu0
  %v512 = vld [vmem:[%s10] sm:$0xff]
  %v513 = vld [vmem:[%s11] sm:$0x1]
  %v515 = vperm.slane %v513, 0
  %v518 = vsel %vm80, %v476, 0
  %v521 = vsel %vm80, %v477, 0
  %523 = vmatpush.msra.mxu0 0.0
  %524 = vmatpush.msra.mxu0 0.0
  %525 = vmatpush.msra.mxu0 0.0
  %526 = vmatpush.msra.mxu0 0.0
  %527 = vmatpush.msra.mxu0 0.0
  %528 = vmatpush.msra.mxu0 0.0
  %529 = vmatpush.msra.mxu0 0.0
  %530 = vmatpush.msra.mxu0 0.0
  %531 = vmatpush.msra.mxu0 0.0
  %532 = vmatpush.msra.mxu0 0.0
  %533 = vmatpush.msra.mxu0 0.0
  %534 = vmatpush.msra.mxu0 0.0
  %535 = vmatpush.msra.mxu0 0.0
  %536 = vmatpush.msra.mxu0 0.0
  %537 = vmatpush.msra.mxu0 0.0
  %538 = vmatpush.msra.mxu0 %v512
  %539 = vmatmul.f32.gmra.mxu0 %v518
  %v540 = vpop.f32.mrf.mxu0
  %v541 = vadd.f32 %v515, %v540
  %542 = vmatmul.f32.gmra.mxu0 %v521
  %v543 = vpop.f32.mrf.mxu0
  %v544 = vadd.f32 %v515, %v543
  %545 = vdwg.mxu0
  %547 = vrot.lane.b32.xlu0 %v507, 120
  %v548 = vpop.permute.xlu0 %547
  %v549 = vsel %vm113, %v507, 0
  %v551 = vsel %vm113, %v548, 0
  %553 = vmatpush.xpose.msra.mxu0 0.0
  %554 = vmatpush.xpose.msra.mxu0 0.0
  %555 = vmatpush.xpose.msra.mxu0 0.0
  %556 = vmatpush.xpose.msra.mxu0 0.0
  %557 = vmatpush.xpose.msra.mxu0 0.0
  %558 = vmatpush.xpose.msra.mxu0 0.0
  %559 = vmatpush.xpose.msra.mxu0 0.0
  %560 = vmatpush.xpose.msra.mxu0 0.0
  %561 = vmatpush.xpose.msra.mxu0 0.0
  %562 = vmatpush.xpose.msra.mxu0 0.0
  %563 = vmatpush.xpose.msra.mxu0 0.0
  %564 = vmatpush.xpose.msra.mxu0 0.0
  %565 = vmatpush.xpose.msra.mxu0 0.0
  %566 = vmatpush.xpose.msra.mxu0 0.0
  %567 = vmatpush.xpose.msra.mxu0 0.0
  %568 = vmatpush.xpose.msra.mxu0 %v551
  %569 = vmatmul.f32.gmra.mxu0 %v549
  %v570 = vpop.f32.mrf.mxu0
  %v571 = vadd.f32 0.0, %v570
  %572 = vdwg.mxu0
  %v573 = vsel %vm80, %v571, -inf
  %574 = vmax.xlane.f32.xlu0 %v573
  %v575 = vpop.xlane.xlu0 %574
  %v576 = vsub.f32 %v571, %v575
  %v577 = vmul.f32 %v576, 1.442695
  %v578 = vpow.pop %v577
  %v579 = vsel %vm80, %v578, 0.0
  %580 = vadd.xlane.f32.xlu0 %v579
  %v581 = vpop.xlane.xlu0 %580
  %v582 = vrcp.pop %v581
  %v583 = vmul.f32 %v578, %v582
  %v585 = vsel %vm80, %v583, 0
  %587 = vmatpush.msra.mxu0 0.0
  %588 = vmatpush.msra.mxu0 0.0
  %589 = vmatpush.msra.mxu0 0.0
  %590 = vmatpush.msra.mxu0 0.0
  %591 = vmatpush.msra.mxu0 0.0
  %592 = vmatpush.msra.mxu0 0.0
  %593 = vmatpush.msra.mxu0 0.0
  %594 = vmatpush.msra.mxu0 0.0
  %595 = vmatpush.msra.mxu0 0.0
  %596 = vmatpush.msra.mxu0 0.0
  %597 = vmatpush.msra.mxu0 0.0
  %598 = vmatpush.msra.mxu0 0.0
  %599 = vmatpush.msra.mxu0 0.0
  %600 = vmatpush.msra.mxu0 0.0
  %601 = vmatpush.msra.mxu0 0.0
  %602 = vmatpush.msra.mxu0 %v541
  %603 = vmatmul.f32.gmra.mxu0 %v585
  %v604 = vpop.f32.mrf.mxu0
  %v605 = vadd.f32 0.0, %v604
  %606 = vdwg.mxu0
  %607 = vrot.lane.b32.xlu0 %v507, 124
  %v608 = vpop.permute.xlu0 %607
  %609 = vrot.lane.b32.xlu0 %v507, 116
  %v610 = vpop.permute.xlu0 %609
  %v611 = vsel %vm113, %v608, 0
  %v613 = vsel %vm113, %v610, 0
  %615 = vmatpush.xpose.msra.mxu0 0.0
  %616 = vmatpush.xpose.msra.mxu0 0.0
  %617 = vmatpush.xpose.msra.mxu0 0.0
  %618 = vmatpush.xpose.msra.mxu0 0.0
  %619 = vmatpush.xpose.msra.mxu0 0.0
  %620 = vmatpush.xpose.msra.mxu0 0.0
  %621 = vmatpush.xpose.msra.mxu0 0.0
  %622 = vmatpush.xpose.msra.mxu0 0.0
  %623 = vmatpush.xpose.msra.mxu0 0.0
  %624 = vmatpush.xpose.msra.mxu0 0.0
  %625 = vmatpush.xpose.msra.mxu0 0.0
  %626 = vmatpush.xpose.msra.mxu0 0.0
  %627 = vmatpush.xpose.msra.mxu0 0.0
  %628 = vmatpush.xpose.msra.mxu0 0.0
  %629 = vmatpush.xpose.msra.mxu0 0.0
  %630 = vmatpush.xpose.msra.mxu0 %v613
  %631 = vmatmul.f32.gmra.mxu0 %v611
  %v632 = vpop.f32.mrf.mxu0
  %v633 = vadd.f32 0.0, %v632
  %634 = vdwg.mxu0
  %v635 = vsel %vm80, %v633, -inf
  %636 = vmax.xlane.f32.xlu0 %v635
  %v637 = vpop.xlane.xlu0 %636
  %v638 = vsub.f32 %v633, %v637
  %v639 = vmul.f32 %v638, 1.442695
  %v640 = vpow.pop %v639
  %v641 = vsel %vm80, %v640, 0.0
  %642 = vadd.xlane.f32.xlu0 %v641
  %v643 = vpop.xlane.xlu0 %642
  %v644 = vrcp.pop %v643
  %v645 = vmul.f32 %v640, %v644
  %647 = vrot.lane.b32.xlu0 %v541, 124
  %v648 = vpop.permute.xlu0 %647
  %v651 = vsel %vm80, %v645, 0
  %653 = vmatpush.msra.mxu0 0.0
  %654 = vmatpush.msra.mxu0 0.0
  %655 = vmatpush.msra.mxu0 0.0
  %656 = vmatpush.msra.mxu0 0.0
  %657 = vmatpush.msra.mxu0 0.0
  %658 = vmatpush.msra.mxu0 0.0
  %659 = vmatpush.msra.mxu0 0.0
  %660 = vmatpush.msra.mxu0 0.0
  %661 = vmatpush.msra.mxu0 0.0
  %662 = vmatpush.msra.mxu0 0.0
  %663 = vmatpush.msra.mxu0 0.0
  %664 = vmatpush.msra.mxu0 0.0
  %665 = vmatpush.msra.mxu0 0.0
  %666 = vmatpush.msra.mxu0 0.0
  %667 = vmatpush.msra.mxu0 0.0
  %668 = vmatpush.msra.mxu0 %v648
  %669 = vmatmul.f32.gmra.mxu0 %v651
  %v670 = vpop.f32.mrf.mxu0
  %v671 = vadd.f32 0.0, %v670
  %672 = vdwg.mxu0
  %674 = vrot.lane.b32.xlu0 %v671, 4
  %v675 = vpop.permute.xlu0 %674
  %v677 = vsel %vm113, %v605, %v675
  %679 = vrot.lane.b32.xlu0 %v510, 120
  %v680 = vpop.permute.xlu0 %679
  %v681 = vsel %vm113, %v510, 0
  %v683 = vsel %vm113, %v680, 0
  %685 = vmatpush.xpose.msra.mxu0 0.0
  %686 = vmatpush.xpose.msra.mxu0 0.0
  %687 = vmatpush.xpose.msra.mxu0 0.0
  %688 = vmatpush.xpose.msra.mxu0 0.0
  %689 = vmatpush.xpose.msra.mxu0 0.0
  %690 = vmatpush.xpose.msra.mxu0 0.0
  %691 = vmatpush.xpose.msra.mxu0 0.0
  %692 = vmatpush.xpose.msra.mxu0 0.0
  %693 = vmatpush.xpose.msra.mxu0 0.0
  %694 = vmatpush.xpose.msra.mxu0 0.0
  %695 = vmatpush.xpose.msra.mxu0 0.0
  %696 = vmatpush.xpose.msra.mxu0 0.0
  %697 = vmatpush.xpose.msra.mxu0 0.0
  %698 = vmatpush.xpose.msra.mxu0 0.0
  %699 = vmatpush.xpose.msra.mxu0 0.0
  %700 = vmatpush.xpose.msra.mxu0 %v683
  %701 = vmatmul.f32.gmra.mxu0 %v681
  %v702 = vpop.f32.mrf.mxu0
  %v703 = vadd.f32 0.0, %v702
  %704 = vdwg.mxu0
  %v705 = vsel %vm80, %v703, -inf
  %706 = vmax.xlane.f32.xlu0 %v705
  %v707 = vpop.xlane.xlu0 %706
  %v708 = vsub.f32 %v703, %v707
  %v709 = vmul.f32 %v708, 1.442695
  %v710 = vpow.pop %v709
  %v711 = vsel %vm80, %v710, 0.0
  %712 = vadd.xlane.f32.xlu0 %v711
  %v713 = vpop.xlane.xlu0 %712
  %v714 = vrcp.pop %v713
  %v715 = vmul.f32 %v710, %v714
  %v717 = vsel %vm80, %v715, 0
  %719 = vmatpush.msra.mxu0 0.0
  %720 = vmatpush.msra.mxu0 0.0
  %721 = vmatpush.msra.mxu0 0.0
  %722 = vmatpush.msra.mxu0 0.0
  %723 = vmatpush.msra.mxu0 0.0
  %724 = vmatpush.msra.mxu0 0.0
  %725 = vmatpush.msra.mxu0 0.0
  %726 = vmatpush.msra.mxu0 0.0
  %727 = vmatpush.msra.mxu0 0.0
  %728 = vmatpush.msra.mxu0 0.0
  %729 = vmatpush.msra.mxu0 0.0
  %730 = vmatpush.msra.mxu0 0.0
  %731 = vmatpush.msra.mxu0 0.0
  %732 = vmatpush.msra.mxu0 0.0
  %733 = vmatpush.msra.mxu0 0.0
  %734 = vmatpush.msra.mxu0 %v544
  %735 = vmatmul.f32.gmra.mxu0 %v717
  %v736 = vpop.f32.mrf.mxu0
  %v737 = vadd.f32 0.0, %v736
  %738 = vdwg.mxu0
  %739 = vrot.lane.b32.xlu0 %v510, 124
  %v740 = vpop.permute.xlu0 %739
  %741 = vrot.lane.b32.xlu0 %v510, 116
  %v742 = vpop.permute.xlu0 %741
  %v743 = vsel %vm113, %v740, 0
  %v745 = vsel %vm113, %v742, 0
  %747 = vmatpush.xpose.msra.mxu0 0.0
  %748 = vmatpush.xpose.msra.mxu0 0.0
  %749 = vmatpush.xpose.msra.mxu0 0.0
  %750 = vmatpush.xpose.msra.mxu0 0.0
  %751 = vmatpush.xpose.msra.mxu0 0.0
  %752 = vmatpush.xpose.msra.mxu0 0.0
  %753 = vmatpush.xpose.msra.mxu0 0.0
  %754 = vmatpush.xpose.msra.mxu0 0.0
  %755 = vmatpush.xpose.msra.mxu0 0.0
  %756 = vmatpush.xpose.msra.mxu0 0.0
  %757 = vmatpush.xpose.msra.mxu0 0.0
  %758 = vmatpush.xpose.msra.mxu0 0.0
  %759 = vmatpush.xpose.msra.mxu0 0.0
  %760 = vmatpush.xpose.msra.mxu0 0.0
  %761 = vmatpush.xpose.msra.mxu0 0.0
  %762 = vmatpush.xpose.msra.mxu0 %v745
  %763 = vmatmul.f32.gmra.mxu0 %v743
  %v764 = vpop.f32.mrf.mxu0
  %v765 = vadd.f32 0.0, %v764
  %766 = vdwg.mxu0
  %v767 = vsel %vm80, %v765, -inf
  %768 = vmax.xlane.f32.xlu0 %v767
  %v769 = vpop.xlane.xlu0 %768
  %v770 = vsub.f32 %v765, %v769
  %v771 = vmul.f32 %v770, 1.442695
  %v772 = vpow.pop %v771
  %v773 = vsel %vm80, %v772, 0.0
  %774 = vadd.xlane.f32.xlu0 %v773
  %v775 = vpop.xlane.xlu0 %774
  %v776 = vrcp.pop %v775
  %v777 = vmul.f32 %v772, %v776
  %779 = vrot.lane.b32.xlu0 %v544, 124
  %v780 = vpop.permute.xlu0 %779
  %v783 = vsel %vm80, %v777, 0
  %785 = vmatpush.msra.mxu0 0.0
  %786 = vmatpush.msra.mxu0 0.0
  %787 = vmatpush.msra.mxu0 0.0
  %788 = vmatpush.msra.mxu0 0.0
  %789 = vmatpush.msra.mxu0 0.0
  %790 = vmatpush.msra.mxu0 0.0
  %791 = vmatpush.msra.mxu0 0.0
  %792 = vmatpush.msra.mxu0 0.0
  %793 = vmatpush.msra.mxu0 0.0
  %794 = vmatpush.msra.mxu0 0.0
  %795 = vmatpush.msra.mxu0 0.0
  %796 = vmatpush.msra.mxu0 0.0
  %797 = vmatpush.msra.mxu0 0.0
  %798 = vmatpush.msra.mxu0 0.0
  %799 = vmatpush.msra.mxu0 0.0
  %800 = vmatpush.msra.mxu0 %v780
  %801 = vmatmul.f32.gmra.mxu0 %v783
  %v802 = vpop.f32.mrf.mxu0
  %v803 = vadd.f32 0.0, %v802
  %804 = vdwg.mxu0
  %806 = vrot.lane.b32.xlu0 %v803, 4
  %v807 = vpop.permute.xlu0 %806
  %v809 = vsel %vm113, %v737, %v807
  %v810 = vld [vmem:[%s12] sm:$0xff]
  %v811 = vld [vmem:[%s13] sm:$0x1]
  %v813 = vperm.slane %v811, 0
  %v816 = vsel %vm80, %v677, 0
  %v819 = vsel %vm80, %v809, 0
  %821 = vmatpush.msra.mxu0 0.0
  %822 = vmatpush.msra.mxu0 0.0
  %823 = vmatpush.msra.mxu0 0.0
  %824 = vmatpush.msra.mxu0 0.0
  %825 = vmatpush.msra.mxu0 0.0
  %826 = vmatpush.msra.mxu0 0.0
  %827 = vmatpush.msra.mxu0 0.0
  %828 = vmatpush.msra.mxu0 0.0
  %829 = vmatpush.msra.mxu0 0.0
  %830 = vmatpush.msra.mxu0 0.0
  %831 = vmatpush.msra.mxu0 0.0
  %832 = vmatpush.msra.mxu0 0.0
  %833 = vmatpush.msra.mxu0 0.0
  %834 = vmatpush.msra.mxu0 0.0
  %835 = vmatpush.msra.mxu0 0.0
  %836 = vmatpush.msra.mxu0 %v810
  %837 = vmatmul.f32.gmra.mxu0 %v816
  %v838 = vpop.f32.mrf.mxu0
  %v839 = vadd.f32 %v813, %v838
  %840 = vmatmul.f32.gmra.mxu0 %v819
  %v841 = vpop.f32.mrf.mxu0
  %v842 = vadd.f32 %v813, %v841
  %843 = vdwg.mxu0
  %v844 = vadd.f32 %v476, %v839
  %v845 = vadd.f32 %v477, %v842
  %v846 = vld [vmem:[%s14] sm:$0x1]
  %v847 = vld [vmem:[%s15] sm:$0x1]
  %v848 = vsel %vm80, %v844, 0.0
  %849 = vadd.xlane.f32.xlu0 %v848
  %v850 = vpop.xlane.xlu0 %849
  %v851 = vsel %vm80, %v845, 0.0
  %852 = vadd.xlane.f32.xlu0 %v851
  %v853 = vpop.xlane.xlu0 %852
  %v854 = vmul.f32 %v850, %v429
  %v855 = vmul.f32 %v853, %v429
  %v856 = vsub.f32 %v844, %v854
  %v857 = vsub.f32 %v845, %v855
  %v858 = vmul.f32 %v856, %v856
  %v859 = vmul.f32 %v857, %v857
  %v860 = vsel %vm80, %v858, 0.0
  %861 = vadd.xlane.f32.xlu0 %v860
  %v862 = vpop.xlane.xlu0 %861
  %v863 = vsel %vm80, %v859, 0.0
  %864 = vadd.xlane.f32.xlu0 %v863
  %v865 = vpop.xlane.xlu0 %864
  %v866 = vmul.f32 %v862, %v429
  %v867 = vmul.f32 %v865, %v429
  %v868 = vadd.f32 %v866, 1e-05
  %v869 = vadd.f32 %v867, 1e-05
  %v870 = vrsqrt.pop %v868
  %v871 = vmul.f32 %v870, %v868
  %v872 = vmul.f32 %v871, %v870
  %v873 = vmul.f32 0.5, %v872
  %v874 = vsub.f32 1.5, %v873
  %v875 = vmul.f32 %v870, %v874
  %vm876 = vweird.f32 %v868
  %vm877 = vweird.f32 %v870
  %vm878 = vmor %vm876, %vm877
  %v879 = vsel %vm878, %v870, %v875
  %v880 = vrsqrt.pop %v869
  %v881 = vmul.f32 %v880, %v869
  %v882 = vmul.f32 %v881, %v880
  %v883 = vmul.f32 0.5, %v882
  %v884 = vsub.f32 1.5, %v883
  %v885 = vmul.f32 %v880, %v884
  %vm886 = vweird.f32 %v869
  %vm887 = vweird.f32 %v880
  %vm888 = vmor %vm886, %vm887
  %v889 = vsel %vm888, %v880, %v885
  %v890 = vmul.f32 %v856, %v879
  %v891 = vmul.f32 %v857, %v889
  %v893 = vperm.slane %v846, 0
  %v895 = vmul.f32 %v890, %v893
  %v896 = vmul.f32 %v891, %v893
  %v898 = vperm.slane %v847, 0
  %v900 = vadd.f32 %v895, %v898
  %v901 = vadd.f32 %v896, %v898
  %v902 = vld [vmem:[%s16] sm:$0xff]
  %v903 = vld [vmem:[%s17] sm:$0x1]
  %v905 = vperm.slane %v903, 0
  %v908 = vsel %vm80, %v900, 0
  %v911 = vsel %vm80, %v901, 0
  %913 = vmatpush.msra.mxu0 0.0
  %914 = vmatpush.msra.mxu0 0.0
  %915 = vmatpush.msra.mxu0 0.0
  %916 = vmatpush.msra.mxu0 0.0
  %917 = vmatpush.msra.mxu0 0.0
  %918 = vmatpush.msra.mxu0 0.0
  %919 = vmatpush.msra.mxu0 0.0
  %920 = vmatpush.msra.mxu0 0.0
  %921 = vmatpush.msra.mxu0 0.0
  %922 = vmatpush.msra.mxu0 0.0
  %923 = vmatpush.msra.mxu0 0.0
  %924 = vmatpush.msra.mxu0 0.0
  %925 = vmatpush.msra.mxu0 0.0
  %926 = vmatpush.msra.mxu0 0.0
  %927 = vmatpush.msra.mxu0 0.0
  %928 = vmatpush.msra.mxu0 %v902
  %929 = vmatmul.f32.gmra.mxu0 %v908
  %v930 = vpop.f32.mrf.mxu0
  %v931 = vadd.f32 %v905, %v930
  %932 = vmatmul.f32.gmra.mxu0 %v911
  %v933 = vpop.f32.mrf.mxu0
  %v934 = vadd.f32 %v905, %v933
  %935 = vdwg.mxu0
  %v936 = vmax.f32 %v931, 0.0
  %v937 = vmax.f32 %v934, 0.0
  %v938 = vld [vmem:[%s18] sm:$0xff]
  %v939 = vld [vmem:[%s18 + $0x8] sm:$0xff]
  %v940 = vld [vmem:[%s18 + $0x10] sm:$0xff]
  %v941 = vld [vmem:[%s18 + $0x18] sm:$0xff]
  %v942 = vld [vmem:[%s18 + $0x20] sm:$0xff]
  %v943 = vld [vmem:[%s18 + $0x28] sm:$0xff]
  %v944 = vld [vmem:[%s18 + $0x30] sm:$0xff]
  %v945 = vld [vmem:[%s18 + $0x38] sm:$0xff]
  %v946 = vld [vmem:[%s19] sm:$0x1]
  %v948 = vperm.slane %v946, 0
  %vm950 = vcmask 523264
  %v952 = vsel %vm950, %v936, 0
  %v955 = vsel %vm950, %v937, 0
  %957 = vmatpush.msra.mxu0 0.0
  %958 = vmatpush.msra.mxu0 0.0
  %959 = vmatpush.msra.mxu0 0.0
  %960 = vmatpush.msra.mxu0 0.0
  %961 = vmatpush.msra.mxu0 0.0
  %962 = vmatpush.msra.mxu0 0.0
  %963 = vmatpush.msra.mxu0 0.0
  %964 = vmatpush.msra.mxu0 0.0
  %965 = vmatpush.msra.mxu0 %v945
  %966 = vmatpush.msra.mxu0 %v944
  %967 = vmatpush.msra.mxu0 %v943
  %968 = vmatpush.msra.mxu0 %v942
  %969 = vmatpush.msra.mxu0 %v941
  %970 = vmatpush.msra.mxu0 %v940
  %971 = vmatpush.msra.mxu0 %v939
  %972 = vmatpush.msra.mxu0 %v938
  %973 = vmatmul.f32.gmra.mxu0 %v952
  %v974 = vpop.f32.mrf.mxu0
  %v975 = vadd.f32 %v948, %v974
  %976 = vmatmul.f32.gmra.mxu0 %v955
  %v977 = vpop.f32.mrf.mxu0
  %v978 = vadd.f32 %v948, %v977
  %979 = vdwg.mxu0
  %v980 = vadd.f32 %v900, %v975
  %v981 = vadd.f32 %v901, %v978
  %v982 = vld [vmem:[%s20] sm:$0x1]
  %v983 = vld [vmem:[%s21] sm:$0x1]
  %v984 = vsel %vm80, %v980, 0.0
  %985 = vadd.xlane.f32.xlu0 %v984
  %v986 = vpop.xlane.xlu0 %985
  %v987 = vsel %vm80, %v981, 0.0
  %988 = vadd.xlane.f32.xlu0 %v987
  %v989 = vpop.xlane.xlu0 %988
  %v990 = vmul.f32 %v986, %v429
  %v991 = vmul.f32 %v989, %v429
  %v992 = vsub.f32 %v980, %v990
  %v993 = vsub.f32 %v981, %v991
  %v994 = vmul.f32 %v992, %v992
  %v995 = vmul.f32 %v993, %v993
  %v996 = vsel %vm80, %v994, 0.0
  %997 = vadd.xlane.f32.xlu0 %v996
  %v998 = vpop.xlane.xlu0 %997
  %v999 = vsel %vm80, %v995, 0.0
  %1000 = vadd.xlane.f32.xlu0 %v999
  %v1001 = vpop.xlane.xlu0 %1000
  %v1002 = vmul.f32 %v998, %v429
  %v1003 = vmul.f32 %v1001, %v429
  %v1004 = vadd.f32 %v1002, 1e-05
  %v1005 = vadd.f32 %v1003, 1e-05
  %v1006 = vrsqrt.pop %v1004
  %v1007 = vmul.f32 %v1006, %v1004
  %v1008 = vmul.f32 %v1007, %v1006
  %v1009 = vmul.f32 0.5, %v1008
  %v1010 = vsub.f32 1.5, %v1009
  %v1011 = vmul.f32 %v1006, %v1010
  %vm1012 = vweird.f32 %v1004
  %vm1013 = vweird.f32 %v1006
  %vm1014 = vmor %vm1012, %vm1013
  %v1015 = vsel %vm1014, %v1006, %v1011
  %v1016 = vrsqrt.pop %v1005
  %v1017 = vmul.f32 %v1016, %v1005
  %v1018 = vmul.f32 %v1017, %v1016
  %v1019 = vmul.f32 0.5, %v1018
  %v1020 = vsub.f32 1.5, %v1019
  %v1021 = vmul.f32 %v1016, %v1020
  %vm1022 = vweird.f32 %v1005
  %vm1023 = vweird.f32 %v1016
  %vm1024 = vmor %vm1022, %vm1023
  %v1025 = vsel %vm1024, %v1016, %v1021
  %v1026 = vmul.f32 %v992, %v1015
  %v1027 = vmul.f32 %v993, %v1025
  %v1029 = vperm.slane %v982, 0
  %v1031 = vmul.f32 %v1026, %v1029
  %v1032 = vmul.f32 %v1027, %v1029
  %v1034 = vperm.slane %v983, 0
  %v1036 = vadd.f32 %v1031, %v1034
  %v1037 = vadd.f32 %v1032, %v1034
  %1038 = vst.msk [vmem:[%s22] sm:$0xff] %vm80, %v1036
  %1039 = vst.msk [vmem:[%s22 + $0x8] sm:$0xff] %vm80, %v1037
  // Predicated region
  $region90: #{tpu_custom_call.1} parent=0 // pred_check
    _
  $region91: #{tpu_custom_call.1} parent=0 // pred_check_branch
    %1041 = sbr.rel (0) target = $region93
  $region92: #{tpu_custom_call.1} parent=0 // pred_region
    _
  $region93: #{tpu_custom_call.1} parent=0 // pred_fallthru
    _
  // Predicated region
  $region94: #{tpu_custom_call.1} parent=0 // pred_check
    _
  $region95: #{tpu_custom_call.1} parent=0 // pred_check_branch
    %1043 = sbr.rel (0) target = $region97
  $region96: #{tpu_custom_call.1} parent=0 // pred_region
    _
  $region97: #{tpu_custom_call.1} parent=0 // pred_fallthru
    _

</llo_original>
